<compile_context>
chip_gen: v6e
topology: v6e:2x2x1
jax: 0.10.0
libtpu: 0.0.40
codegen_flags: <defaults>
</compile_context>

<pallas_src>
import jax
import jax.numpy as jnp
from jax.experimental import pallas as pl
from jax.experimental.pallas import tpu as pltpu

# ----------------------------- configuration --------------------------------
BATCH = 2
TIME_STEPS = 16
BETA_1 = 1e-4
BETA_T = 0.02
BPS_DIM = 64
CHOIR_DIM = 2
TEMPORAL_DIM = 32
HIDDEN_DIM = 128          # small-scale stand-in for hidden_dim=1024
OUTPUT_CHANNELS = 1       # 'contact' not in backbone -> output_channels = 1

X_FLAT_DIM = BPS_DIM * CHOIR_DIM              # 128 (lane-dense already)
IN_DIM = X_FLAT_DIM + TEMPORAL_DIM            # 160 (logical first-layer fan-in)
OUT_DIM = BPS_DIM * OUTPUT_CHANNELS           # 64
OUT_PAD = 128                                 # lane-pad the backbone output

# Batch tile: >= MXU systolic depth (256 on v6e/v7x, 128 on v5e), multiple of 8.
TILE_B = 256


# --------------------------- fused forward kernel ----------------------------
def _fused_bps_diffusion_kernel(
        x_ref, eps_ref, sa_ref, s1ma_ref, temb_ref,
        w0_ref, b0_ref, w1_ref, b1_ref, w2_ref, b2_ref, wo_ref, bo_ref,
        out_ref):
    bf = jnp.bfloat16
    f32 = jnp.float32

    # ---- diffusion noising (f32, VPU): per-row scalars broadcast over lanes ----
    diffused = sa_ref[...] * x_ref[...] + s1ma_ref[...] * eps_ref[...]

    # ---- MLP-ResNet backbone: bf16 MXU operands, f32 accumulation/epilogue ----
    # Layer 0: the time-embedding part of the first matmul was folded into
    # temb_ref in the wrapper ( [x | t_emb(t)] @ W0 == x @ W0x + (emb @ W0t)[t] ).
    h0 = (jnp.dot(diffused.astype(bf), w0_ref[...], preferred_element_type=f32)
          + temb_ref[...] + b0_ref[...])
    h0 = jnp.maximum(h0, 0.0)
    # Residual MLP block.
    r = jnp.maximum(
        jnp.dot(h0.astype(bf), w1_ref[...], preferred_element_type=f32)
        + b1_ref[...], 0.0)
    h = h0 + jnp.dot(r.astype(bf), w2_ref[...], preferred_element_type=f32) \
        + b2_ref[...]
    # Output projection (columns padded 64 -> 128 for lane-dense stores).
    out_ref[...] = (jnp.dot(h.astype(bf), wo_ref[...], preferred_element_type=f32)
                    + bo_ref[...])


def fused_forward(x_flat, eps_flat, sqrt_a, sqrt_1ma, temb, params):
    """Single pallas_call: diffuse + time-embed + MLP-ResNet backbone.

    Batch-tile grid; weights are held resident in VMEM across all tiles.
    """
    padded_b = x_flat.shape[0]
    num_tiles = padded_b // TILE_B
    w0x, b0, w1, b1, w2, b2, wo_pad, bo_pad = params

    def tiled(cols):
        return pl.BlockSpec((TILE_B, cols), lambda i: (i, 0))

    def resident(shape):
        return pl.BlockSpec(shape, lambda i: (0, 0))

    return pl.pallas_call(
        _fused_bps_diffusion_kernel,
        out_shape=jax.ShapeDtypeStruct((padded_b, OUT_PAD), jnp.float32),
        grid=(num_tiles,),
        in_specs=[
            tiled(X_FLAT_DIM),                    # x          (TILE_B, 128)
            tiled(X_FLAT_DIM),                    # eps        (TILE_B, 128)
            tiled(1),                             # sqrt(alpha[t])     (TILE_B, 1)
            tiled(1),                             # sqrt(1 - alpha[t]) (TILE_B, 1)
            tiled(HIDDEN_DIM),                    # time-emb contribution
            resident((X_FLAT_DIM, HIDDEN_DIM)),   # w0x  (bf16, resident)
            resident((1, HIDDEN_DIM)),            # b0
            resident((HIDDEN_DIM, HIDDEN_DIM)),   # w1   (bf16, resident)
            resident((1, HIDDEN_DIM)),            # b1
            resident((HIDDEN_DIM, HIDDEN_DIM)),   # w2   (bf16, resident)
            resident((1, HIDDEN_DIM)),            # b2
            resident((HIDDEN_DIM, OUT_PAD)),      # wo   (bf16, lane-padded)
            resident((1, OUT_PAD)),               # bo   (lane-padded)
        ],
        out_specs=pl.BlockSpec((TILE_B, OUT_PAD), lambda i: (i, 0)),
        compiler_params=pltpu.CompilerParams(
            dimension_semantics=("parallel",)),   # v7x: shard batch over 2 TCs
    )(x_flat, eps_flat, sqrt_a, sqrt_1ma, temb,
      w0x, b0, w1, b1, w2, b2, wo_pad, bo_pad)


# ------------------------------ glue (plain JAX) -----------------------------
def sinusoidal_table(time_steps, dim):
    """Precomputed sinusoidal positional encoding table (time_steps, dim)."""
    half = dim // 2
    freqs = jnp.exp(-jnp.log(10000.0) * jnp.arange(half, dtype=jnp.float32) / half)
    args = jnp.arange(time_steps, dtype=jnp.float32)[:, None] * freqs[None, :]
    return jnp.concatenate([jnp.sin(args), jnp.cos(args)], axis=-1)


def make_schedule():
    beta = jnp.linspace(BETA_1, BETA_T, TIME_STEPS, dtype=jnp.float32)
    # exp(tril(ones) @ log(1 - beta)) == exp(cumsum(log(1 - beta))) == cumprod(1-beta)
    alpha = jnp.exp(jnp.cumsum(jnp.log(1.0 - beta)))
    sqrt_alpha = jnp.sqrt(alpha)              # precomputed: no EUP work in-kernel
    sqrt_1m_alpha = jnp.sqrt(1.0 - alpha)
    return alpha, sqrt_alpha, sqrt_1m_alpha


def init_backbone_params(key):
    ks = jax.random.split(key, 4)
    scale = lambda fan_in: 1.0 / jnp.sqrt(jnp.float32(fan_in))
    w0 = jax.random.normal(ks[0], (IN_DIM, HIDDEN_DIM), jnp.float32) * scale(IN_DIM)
    b0 = jnp.zeros((1, HIDDEN_DIM), jnp.float32)
    w1 = jax.random.normal(ks[1], (HIDDEN_DIM, HIDDEN_DIM), jnp.float32) * scale(HIDDEN_DIM)
    b1 = jnp.zeros((1, HIDDEN_DIM), jnp.float32)
    w2 = jax.random.normal(ks[2], (HIDDEN_DIM, HIDDEN_DIM), jnp.float32) * scale(HIDDEN_DIM)
    b2 = jnp.zeros((1, HIDDEN_DIM), jnp.float32)
    wo = jax.random.normal(ks[3], (HIDDEN_DIM, OUT_DIM), jnp.float32) * scale(HIDDEN_DIM)
    bo = jnp.zeros((1, OUT_DIM), jnp.float32)

    # --- repack for the fused, lane-dense, bf16-MXU kernel ---
    bf = jnp.bfloat16
    emb_table = sinusoidal_table(TIME_STEPS, TEMPORAL_DIM)          # (T, 32) f32
    w0x = w0[:X_FLAT_DIM].astype(bf)                                # (128, 128)
    # Effective per-timestep first-layer contribution of the time embedding:
    #   [x | emb(t)] @ W0 == x @ W0x + (emb_table @ W0t)[t]
    w0t_eff = emb_table @ w0[X_FLAT_DIM:]                           # (T, 128) f32
    wo_pad = jnp.pad(wo, ((0, 0), (0, OUT_PAD - OUT_DIM))).astype(bf)  # (128, 128)
    bo_pad = jnp.pad(bo, ((0, 0), (0, OUT_PAD - OUT_DIM)))             # (1, 128)
    kernel_params = (w0x, b0, w1.astype(bf), b1, w2.astype(bf), b2, wo_pad, bo_pad)
    return kernel_params, w0t_eff


def bps_diffusion_forward(x, sqrt_alpha_tbl, sqrt_1m_alpha_tbl, w0t_eff,
                          kernel_params, key):
    """Forward pass of BPSDiffusionModel (embed_full_choir=False, y=None)."""
    B = x.shape[0]
    k_t, k_eps = jax.random.split(key)
    t = jax.random.randint(k_t, (B, 1), 0, TIME_STEPS, dtype=jnp.int32)  # (B, 1)
    eps = jax.random.normal(k_eps, x.shape, dtype=x.dtype)               # randn_like(x)

    # Wrapper-side tiny gathers (~KBs): schedule scalars + time-embedding row.
    t_idx = t[:, 0]
    sqrt_a = jnp.take(sqrt_alpha_tbl, t_idx)[:, None]                    # (B, 1)
    sqrt_1ma = jnp.take(sqrt_1m_alpha_tbl, t_idx)[:, None]               # (B, 1)
    temb = jnp.take(w0t_eff, t_idx, axis=0)                              # (B, 128)

    # Lane-dense, batch-tile-padded views for the fused kernel.
    padded_b = pl.cdiv(B, TILE_B) * TILE_B
    pad = padded_b - B
    x_flat = jnp.pad(x.reshape(B, -1), ((0, pad), (0, 0)))               # (pB, 128)
    eps_flat = jnp.pad(eps.reshape(B, -1), ((0, pad), (0, 0)))           # (pB, 128)
    sqrt_a = jnp.pad(sqrt_a, ((0, pad), (0, 0)))                         # (pB, 1)
    sqrt_1ma = jnp.pad(sqrt_1ma, ((0, pad), (0, 0)))                     # (pB, 1)
    temb = jnp.pad(temb, ((0, pad), (0, 0)))                             # (pB, 128)

    out = fused_forward(x_flat, eps_flat, sqrt_a, sqrt_1ma, temb, kernel_params)
    eps_hat = out[:B, :OUT_DIM].reshape(B, BPS_DIM, OUTPUT_CHANNELS)     # (B, bps, 1)
    return eps_hat, eps


# --------------------------- pure-JAX reference ------------------------------
def reference_eps_hat(x, eps, t, sqrt_alpha_tbl, sqrt_1m_alpha_tbl, w0t_eff,
                      kernel_params):
    """bf16-matched JAX reference of the fused kernel (for validation)."""
    w0x, b0, w1, b1, w2, b2, wo_pad, bo_pad = kernel_params
    bf, f32 = jnp.bfloat16, jnp.float32
    B = x.shape[0]
    ti = t[:, 0]
    sa = sqrt_alpha_tbl[ti][:, None]
    s1 = sqrt_1m_alpha_tbl[ti][:, None]
    d = sa * x.reshape(B, -1) + s1 * eps.reshape(B, -1)
    h0 = jnp.maximum(jnp.dot(d.astype(bf), w0x, preferred_element_type=f32)
                     + w0t_eff[ti] + b0, 0.0)
    r = jnp.maximum(jnp.dot(h0.astype(bf), w1, preferred_element_type=f32) + b1, 0.0)
    h = h0 + jnp.dot(r.astype(bf), w2, preferred_element_type=f32) + b2
    out = jnp.dot(h.astype(bf), wo_pad, preferred_element_type=f32) + bo_pad
    return out[:, :OUT_DIM].reshape(B, BPS_DIM, OUTPUT_CHANNELS)


# ----------------------------------- main ------------------------------------
if __name__ == "__main__":
    root = jax.random.PRNGKey(0)
    k_x, k_params, k_fwd = jax.random.split(root, 3)

    x = jax.random.normal(k_x, (BATCH, BPS_DIM, CHOIR_DIM), jnp.float32)
    _, sqrt_alpha_tbl, sqrt_1m_alpha_tbl = make_schedule()
    kernel_params, w0t_eff = init_backbone_params(k_params)

    fwd = jax.jit(bps_diffusion_forward)
    eps_hat, eps = fwd(x, sqrt_alpha_tbl, sqrt_1m_alpha_tbl, w0t_eff,
                       kernel_params, k_fwd)
    eps_hat = jax.block_until_ready(eps_hat)
    eps = jax.block_until_ready(eps)

    assert eps_hat.shape == (BATCH, BPS_DIM, OUTPUT_CHANNELS)
    assert eps.shape == (BATCH, BPS_DIM, CHOIR_DIM)
    assert not bool(jnp.isnan(eps_hat).any())

    # Validate against a bf16-matched pure-JAX reference (same t/eps draws).
    k_t, _ = jax.random.split(k_fwd)
    t_check = jax.random.randint(k_t, (BATCH, 1), 0, TIME_STEPS, dtype=jnp.int32)
    ref = reference_eps_hat(x, eps, t_check, sqrt_alpha_tbl, sqrt_1m_alpha_tbl,
                            w0t_eff, kernel_params)
    assert bool(jnp.allclose(eps_hat, ref, atol=5e-3, rtol=5e-3)), \
        f"max abs diff {float(jnp.max(jnp.abs(eps_hat - ref)))}"

    print("KERNEL_OK")
</pallas_src>

<mosaic_0001>
module attributes {stable_mosaic.version = 11 : i64} {
  func.func @_fused_bps_diffusion_kernel(%arg0: i32, %arg1: memref<256x128xf32, #tpu.memory_space<vmem>>, %arg2: memref<256x128xf32, #tpu.memory_space<vmem>>, %arg3: memref<256x1xf32, #tpu.memory_space<vmem>>, %arg4: memref<256x1xf32, #tpu.memory_space<vmem>>, %arg5: memref<256x128xf32, #tpu.memory_space<vmem>>, %arg6: memref<128x128xbf16, #tpu.memory_space<vmem>>, %arg7: memref<1x128xf32, #tpu.memory_space<vmem>>, %arg8: memref<128x128xbf16, #tpu.memory_space<vmem>>, %arg9: memref<1x128xf32, #tpu.memory_space<vmem>>, %arg10: memref<128x128xbf16, #tpu.memory_space<vmem>>, %arg11: memref<1x128xf32, #tpu.memory_space<vmem>>, %arg12: memref<128x128xbf16, #tpu.memory_space<vmem>>, %arg13: memref<1x128xf32, #tpu.memory_space<vmem>>, %arg14: memref<256x128xf32, #tpu.memory_space<vmem>>) attributes {dimension_semantics = [#tpu.dimension_semantics<parallel>], iteration_bounds = array<i64: 1>, scalar_prefetch = 0 : i64, scratch_operands = 0 : i64, tpu.core_type = #tpu.core_type<tc>, window_params = [{transform_indices = @transform_0, window_bounds = array<i64: 256, 128>}, {transform_indices = @transform_1, window_bounds = array<i64: 256, 128>}, {transform_indices = @transform_2, window_bounds = array<i64: 256, 1>}, {transform_indices = @transform_3, window_bounds = array<i64: 256, 1>}, {transform_indices = @transform_4, window_bounds = array<i64: 256, 128>}, {pipeline_mode = #tpu.pipeline_mode<synchronous>, transform_indices = @transform_5, window_bounds = array<i64: 128, 128>}, {pipeline_mode = #tpu.pipeline_mode<synchronous>, transform_indices = @transform_6, window_bounds = array<i64: 1, 128>}, {pipeline_mode = #tpu.pipeline_mode<synchronous>, transform_indices = @transform_7, window_bounds = array<i64: 128, 128>}, {pipeline_mode = #tpu.pipeline_mode<synchronous>, transform_indices = @transform_8, window_bounds = array<i64: 1, 128>}, {pipeline_mode = #tpu.pipeline_mode<synchronous>, transform_indices = @transform_9, window_bounds = array<i64: 128, 128>}, {pipeline_mode = #tpu.pipeline_mode<synchronous>, transform_indices = @transform_10, window_bounds = array<i64: 1, 128>}, {pipeline_mode = #tpu.pipeline_mode<synchronous>, transform_indices = @transform_11, window_bounds = array<i64: 128, 128>}, {pipeline_mode = #tpu.pipeline_mode<synchronous>, transform_indices = @transform_12, window_bounds = array<i64: 1, 128>}, {transform_indices = @transform_13, window_bounds = array<i64: 256, 128>}]} {
    %c0 = arith.constant 0 : index
    %c0_0 = arith.constant 0 : index
    %0 = vector.load %arg3[%c0, %c0_0] : memref<256x1xf32, #tpu.memory_space<vmem>>, vector<256x1xf32>
    %c0_1 = arith.constant 0 : index
    %c0_2 = arith.constant 0 : index
    %1 = vector.load %arg1[%c0_1, %c0_2] : memref<256x128xf32, #tpu.memory_space<vmem>>, vector<256x128xf32>
    %2 = vector.broadcast %0 : vector<256x1xf32> to vector<256x128xf32>
    %3 = arith.mulf %2, %1 : vector<256x128xf32>
    %c0_3 = arith.constant 0 : index
    %c0_4 = arith.constant 0 : index
    %4 = vector.load %arg4[%c0_3, %c0_4] : memref<256x1xf32, #tpu.memory_space<vmem>>, vector<256x1xf32>
    %c0_5 = arith.constant 0 : index
    %c0_6 = arith.constant 0 : index
    %5 = vector.load %arg2[%c0_5, %c0_6] : memref<256x128xf32, #tpu.memory_space<vmem>>, vector<256x128xf32>
    %6 = vector.broadcast %4 : vector<256x1xf32> to vector<256x128xf32>
    %7 = arith.mulf %6, %5 : vector<256x128xf32>
    %8 = arith.addf %3, %7 : vector<256x128xf32>
    %9 = arith.truncf %8 : vector<256x128xf32> to vector<256x128xbf16>
    %c0_7 = arith.constant 0 : index
    %c0_8 = arith.constant 0 : index
    %10 = vector.load %arg6[%c0_7, %c0_8] : memref<128x128xbf16, #tpu.memory_space<vmem>>, vector<128x128xbf16>
    %cst = arith.constant dense<0.000000e+00> : vector<256x128xf32>
    %11 = tpu.matmul %9, %10, %cst {dimension_numbers = #tpu.dot_dimension_numbers<[1], [0], [0], [1], [0, 0, 1, 1], [], []>} : vector<256x128xbf16>, vector<128x128xbf16>, vector<256x128xf32> -> vector<256x128xf32>
    %c0_9 = arith.constant 0 : index
    %c0_10 = arith.constant 0 : index
    %12 = vector.load %arg5[%c0_9, %c0_10] : memref<256x128xf32, #tpu.memory_space<vmem>>, vector<256x128xf32>
    %13 = arith.addf %11, %12 : vector<256x128xf32>
    %c0_11 = arith.constant 0 : index
    %c0_12 = arith.constant 0 : index
    %14 = vector.load %arg7[%c0_11, %c0_12] : memref<1x128xf32, #tpu.memory_space<vmem>>, vector<1x128xf32>
    %15 = vector.broadcast %14 : vector<1x128xf32> to vector<256x128xf32>
    %16 = arith.addf %13, %15 : vector<256x128xf32>
    %cst_13 = arith.constant 0.000000e+00 : f32
    %17 = vector.broadcast %cst_13 : f32 to vector<256x128xf32>
    %18 = arith.maximumf %16, %17 : vector<256x128xf32>
    %19 = arith.truncf %18 : vector<256x128xf32> to vector<256x128xbf16>
    %c0_14 = arith.constant 0 : index
    %c0_15 = arith.constant 0 : index
    %20 = vector.load %arg8[%c0_14, %c0_15] : memref<128x128xbf16, #tpu.memory_space<vmem>>, vector<128x128xbf16>
    %cst_16 = arith.constant dense<0.000000e+00> : vector<256x128xf32>
    %21 = tpu.matmul %19, %20, %cst_16 {dimension_numbers = #tpu.dot_dimension_numbers<[1], [0], [0], [1], [0, 0, 1, 1], [], []>} : vector<256x128xbf16>, vector<128x128xbf16>, vector<256x128xf32> -> vector<256x128xf32>
    %c0_17 = arith.constant 0 : index
    %c0_18 = arith.constant 0 : index
    %22 = vector.load %arg9[%c0_17, %c0_18] : memref<1x128xf32, #tpu.memory_space<vmem>>, vector<1x128xf32>
    %23 = vector.broadcast %22 : vector<1x128xf32> to vector<256x128xf32>
    %24 = arith.addf %21, %23 : vector<256x128xf32>
    %cst_19 = arith.constant 0.000000e+00 : f32
    %25 = vector.broadcast %cst_19 : f32 to vector<256x128xf32>
    %26 = arith.maximumf %24, %25 : vector<256x128xf32>
    %27 = arith.truncf %26 : vector<256x128xf32> to vector<256x128xbf16>
    %c0_20 = arith.constant 0 : index
    %c0_21 = arith.constant 0 : index
    %28 = vector.load %arg10[%c0_20, %c0_21] : memref<128x128xbf16, #tpu.memory_space<vmem>>, vector<128x128xbf16>
    %cst_22 = arith.constant dense<0.000000e+00> : vector<256x128xf32>
    %29 = tpu.matmul %27, %28, %cst_22 {dimension_numbers = #tpu.dot_dimension_numbers<[1], [0], [0], [1], [0, 0, 1, 1], [], []>} : vector<256x128xbf16>, vector<128x128xbf16>, vector<256x128xf32> -> vector<256x128xf32>
    %30 = arith.addf %18, %29 : vector<256x128xf32>
    %c0_23 = arith.constant 0 : index
    %c0_24 = arith.constant 0 : index
    %31 = vector.load %arg11[%c0_23, %c0_24] : memref<1x128xf32, #tpu.memory_space<vmem>>, vector<1x128xf32>
    %32 = vector.broadcast %31 : vector<1x128xf32> to vector<256x128xf32>
    %33 = arith.addf %30, %32 : vector<256x128xf32>
    %34 = arith.truncf %33 : vector<256x128xf32> to vector<256x128xbf16>
    %c0_25 = arith.constant 0 : index
    %c0_26 = arith.constant 0 : index
    %35 = vector.load %arg12[%c0_25, %c0_26] : memref<128x128xbf16, #tpu.memory_space<vmem>>, vector<128x128xbf16>
    %cst_27 = arith.constant dense<0.000000e+00> : vector<256x128xf32>
    %36 = tpu.matmul %34, %35, %cst_27 {dimension_numbers = #tpu.dot_dimension_numbers<[1], [0], [0], [1], [0, 0, 1, 1], [], []>} : vector<256x128xbf16>, vector<128x128xbf16>, vector<256x128xf32> -> vector<256x128xf32>
    %c0_28 = arith.constant 0 : index
    %c0_29 = arith.constant 0 : index
    %37 = vector.load %arg13[%c0_28, %c0_29] : memref<1x128xf32, #tpu.memory_space<vmem>>, vector<1x128xf32>
    %38 = vector.broadcast %37 : vector<1x128xf32> to vector<256x128xf32>
    %39 = arith.addf %36, %38 : vector<256x128xf32>
    %c0_30 = arith.constant 0 : index
    %c0_31 = arith.constant 0 : index
    %40 = vector.load %arg14[%c0_30, %c0_31] : memref<256x128xf32, #tpu.memory_space<vmem>>, vector<256x128xf32>
    tpu.vector_store %arg14[%c0_30, %c0_31], %39 {strides = array<i32>} : memref<256x128xf32, #tpu.memory_space<vmem>>, vector<256x128xf32>,
    return
  }
  func.func @transform_0(%arg0: i32) -> (i32, i32) {
    %c0_i32 = arith.constant 0 : i32
    %c0_i32_0 = arith.constant 0 : i32
    return %arg0, %c0_i32 : i32, i32
  }
  func.func @transform_1(%arg0: i32) -> (i32, i32) {
    %c0_i32 = arith.constant 0 : i32
    %c0_i32_0 = arith.constant 0 : i32
    return %arg0, %c0_i32 : i32, i32
  }
  func.func @transform_2(%arg0: i32) -> (i32, i32) {
    %c0_i32 = arith.constant 0 : i32
    %c0_i32_0 = arith.constant 0 : i32
    return %arg0, %c0_i32 : i32, i32
  }
  func.func @transform_3(%arg0: i32) -> (i32, i32) {
    %c0_i32 = arith.constant 0 : i32
    %c0_i32_0 = arith.constant 0 : i32
    return %arg0, %c0_i32 : i32, i32
  }
  func.func @transform_4(%arg0: i32) -> (i32, i32) {
    %c0_i32 = arith.constant 0 : i32
    %c0_i32_0 = arith.constant 0 : i32
    return %arg0, %c0_i32 : i32, i32
  }
  func.func @transform_5(%arg0: i32) -> (i32, i32) {
    %c0_i32 = arith.constant 0 : i32
    %c0_i32_0 = arith.constant 0 : i32
    %c0_i32_1 = arith.constant 0 : i32
    return %c0_i32, %c0_i32_0 : i32, i32
  }
  func.func @transform_6(%arg0: i32) -> (i32, i32) {
    %c0_i32 = arith.constant 0 : i32
    %c0_i32_0 = arith.constant 0 : i32
    %c0_i32_1 = arith.constant 0 : i32
    return %c0_i32, %c0_i32_0 : i32, i32
  }
  func.func @transform_7(%arg0: i32) -> (i32, i32) {
    %c0_i32 = arith.constant 0 : i32
    %c0_i32_0 = arith.constant 0 : i32
    %c0_i32_1 = arith.constant 0 : i32
    return %c0_i32, %c0_i32_0 : i32, i32
  }
  func.func @transform_8(%arg0: i32) -> (i32, i32) {
    %c0_i32 = arith.constant 0 : i32
    %c0_i32_0 = arith.constant 0 : i32
    %c0_i32_1 = arith.constant 0 : i32
    return %c0_i32, %c0_i32_0 : i32, i32
  }
  func.func @transform_9(%arg0: i32) -> (i32, i32) {
    %c0_i32 = arith.constant 0 : i32
    %c0_i32_0 = arith.constant 0 : i32
    %c0_i32_1 = arith.constant 0 : i32
    return %c0_i32, %c0_i32_0 : i32, i32
  }
  func.func @transform_10(%arg0: i32) -> (i32, i32) {
    %c0_i32 = arith.constant 0 : i32
    %c0_i32_0 = arith.constant 0 : i32
    %c0_i32_1 = arith.constant 0 : i32
    return %c0_i32, %c0_i32_0 : i32, i32
  }
  func.func @transform_11(%arg0: i32) -> (i32, i32) {
    %c0_i32 = arith.constant 0 : i32
    %c0_i32_0 = arith.constant 0 : i32
    %c0_i32_1 = arith.constant 0 : i32
    return %c0_i32, %c0_i32_0 : i32, i32
  }
  func.func @transform_12(%arg0: i32) -> (i32, i32) {
    %c0_i32 = arith.constant 0 : i32
    %c0_i32_0 = arith.constant 0 : i32
    %c0_i32_1 = arith.constant 0 : i32
    return %c0_i32, %c0_i32_0 : i32, i32
  }
  func.func @transform_13(%arg0: i32) -> (i32, i32) {
    %c0_i32 = arith.constant 0 : i32
    %c0_i32_0 = arith.constant 0 : i32
    return %arg0, %c0_i32 : i32, i32
  }
}

</mosaic_0001>

<llo_original>
// kernel: bps_diffusion_forward.1
$region0: #{bps_diffusion_forward.1}
  #allocation0 [shape = 'u32[]', space=smem, size = 0x4, offset = 0x4, fixed_abs, tag = 'smem constant byte address 0x4 - core index']
  #allocation1 [shape = 'u32[144,128]{1,0:T(1,128)}', space=vmem, size = 0x12000, scoped, tag = 'internal scratch']
  %s0 = inlined_call_operand.vmem [shape: f32[256,128], index: 0, kind: input, shape index: {}]
  %s1 = inlined_call_operand.vmem [shape: f32[256,128], index: 1, kind: input, shape index: {}]
  %s2 = inlined_call_operand.vmem [shape: f32[256,1], index: 2, kind: input, shape index: {}]
  %s3 = inlined_call_operand.vmem [shape: f32[256,1], index: 3, kind: input, shape index: {}]
  %s4 = inlined_call_operand.vmem [shape: f32[256,128], index: 4, kind: input, shape index: {}]
  %s5 = inlined_call_operand.vmem [shape: bf16[128,128], index: 5, kind: input, shape index: {}]
  %s6 = inlined_call_operand.vmem [shape: f32[1,128], index: 6, kind: input, shape index: {}]
  %s7 = inlined_call_operand.vmem [shape: bf16[128,128], index: 7, kind: input, shape index: {}]
  %s8 = inlined_call_operand.vmem [shape: f32[1,128], index: 8, kind: input, shape index: {}]
  %s9 = inlined_call_operand.vmem [shape: bf16[128,128], index: 9, kind: input, shape index: {}]
  %s10 = inlined_call_operand.vmem [shape: f32[1,128], index: 10, kind: input, shape index: {}]
  %s11 = inlined_call_operand.vmem [shape: bf16[128,128], index: 11, kind: input, shape index: {}]
  %s12 = inlined_call_operand.vmem [shape: f32[1,128], index: 12, kind: input, shape index: {}]
  %s13 = inlined_call_operand.vmem [shape: f32[256,128], index: 13, kind: output, shape index: {}]
  %s14 = sld [smem:[#allocation0]]
  $region62: #{bps_diffusion_forward.1} parent=0
    _
  %s16 = ssub.s32 1, %s14
  %s17 = scalar_select 0, %s16, %s14
  // Predicated region
  $region2: #{bps_diffusion_forward.1} parent=0 // pred_check
    _
  $region3: #{bps_diffusion_forward.1} parent=0 // pred_check_branch
    %19 = sbr.rel (0) target = $region5
  $region4: #{bps_diffusion_forward.1} parent=0 // pred_region
    _
  $region5: #{bps_diffusion_forward.1} parent=0 // pred_fallthru
    _
  // Predicated region
  $region6: #{bps_diffusion_forward.1} parent=0 // pred_check
    _
  $region7: #{bps_diffusion_forward.1} parent=0 // pred_check_branch
    %21 = sbr.rel (0) target = $region9
  $region8: #{bps_diffusion_forward.1} parent=0 // pred_region
    _
  $region9: #{bps_diffusion_forward.1} parent=0 // pred_fallthru
    _
  // Predicated region
  $region10: #{bps_diffusion_forward.1} parent=0 // pred_check
    _
  $region11: #{bps_diffusion_forward.1} parent=0 // pred_check_branch
    %23 = sbr.rel (0) target = $region13
  $region12: #{bps_diffusion_forward.1} parent=0 // pred_region
    _
  $region13: #{bps_diffusion_forward.1} parent=0 // pred_fallthru
    _
  // Predicated region
  $region14: #{bps_diffusion_forward.1} parent=0 // pred_check
    _
  $region15: #{bps_diffusion_forward.1} parent=0 // pred_check_branch
    %25 = sbr.rel (0) target = $region17
  $region16: #{bps_diffusion_forward.1} parent=0 // pred_region
    _
  $region17: #{bps_diffusion_forward.1} parent=0 // pred_fallthru
    _
  // Predicated region
  $region18: #{bps_diffusion_forward.1} parent=0 // pred_check
    _
  $region19: #{bps_diffusion_forward.1} parent=0 // pred_check_branch
    %27 = sbr.rel (0) target = $region21
  $region20: #{bps_diffusion_forward.1} parent=0 // pred_region
    _
  $region21: #{bps_diffusion_forward.1} parent=0 // pred_fallthru
    _
  // Predicated region
  $region22: #{bps_diffusion_forward.1} parent=0 // pred_check
    _
  $region23: #{bps_diffusion_forward.1} parent=0 // pred_check_branch
    %29 = sbr.rel (0) target = $region25
  $region24: #{bps_diffusion_forward.1} parent=0 // pred_region
    _
  $region25: #{bps_diffusion_forward.1} parent=0 // pred_fallthru
    _
  // Predicated region
  $region26: #{bps_diffusion_forward.1} parent=0 // pred_check
    _
  $region27: #{bps_diffusion_forward.1} parent=0 // pred_check_branch
    %31 = sbr.rel (0) target = $region29
  $region28: #{bps_diffusion_forward.1} parent=0 // pred_region
    _
  $region29: #{bps_diffusion_forward.1} parent=0 // pred_fallthru
    _
  // Predicated region
  $region30: #{bps_diffusion_forward.1} parent=0 // pred_check
    _
  $region31: #{bps_diffusion_forward.1} parent=0 // pred_check_branch
    %33 = sbr.rel (0) target = $region33
  $region32: #{bps_diffusion_forward.1} parent=0 // pred_region
    _
  $region33: #{bps_diffusion_forward.1} parent=0 // pred_fallthru
    _
  // Predicated region
  $region34: #{bps_diffusion_forward.1} parent=0 // pred_check
    _
  $region35: #{bps_diffusion_forward.1} parent=0 // pred_check_branch
    %35 = sbr.rel (0) target = $region37
  $region36: #{bps_diffusion_forward.1} parent=0 // pred_region
    _
  $region37: #{bps_diffusion_forward.1} parent=0 // pred_fallthru
    _
  // Predicated region
  $region38: #{bps_diffusion_forward.1} parent=0 // pred_check
    _
  $region39: #{bps_diffusion_forward.1} parent=0 // pred_check_branch
    %37 = sbr.rel (0) target = $region41
  $region40: #{bps_diffusion_forward.1} parent=0 // pred_region
    _
  $region41: #{bps_diffusion_forward.1} parent=0 // pred_fallthru
    _
  // Predicated region
  $region42: #{bps_diffusion_forward.1} parent=0 // pred_check
    _
  $region43: #{bps_diffusion_forward.1} parent=0 // pred_check_branch
    %39 = sbr.rel (0) target = $region45
  $region44: #{bps_diffusion_forward.1} parent=0 // pred_region
    _
  $region45: #{bps_diffusion_forward.1} parent=0 // pred_fallthru
    _
  // Predicated region
  $region46: #{bps_diffusion_forward.1} parent=0 // pred_check
    _
  $region47: #{bps_diffusion_forward.1} parent=0 // pred_check_branch
    %41 = sbr.rel (0) target = $region49
  $region48: #{bps_diffusion_forward.1} parent=0 // pred_region
    _
  $region49: #{bps_diffusion_forward.1} parent=0 // pred_fallthru
    _
  // Predicated region
  $region50: #{bps_diffusion_forward.1} parent=0 // pred_check
    _
  $region51: #{bps_diffusion_forward.1} parent=0 // pred_check_branch
    %43 = sbr.rel (0) target = $region53
  $region52: #{bps_diffusion_forward.1} parent=0 // pred_region
    _
  $region53: #{bps_diffusion_forward.1} parent=0 // pred_fallthru
    _
  %v45 = vld [vmem:[%s2] sm:$0xff]
  %v46 = vld [vmem:[%s2 + $0x8] sm:$0xff]
  %v47 = vld [vmem:[%s2 + $0x10] sm:$0xff]
  %v48 = vld [vmem:[%s2 + $0x18] sm:$0xff]
  %v49 = vld [vmem:[%s2 + $0x20] sm:$0xff]
  %v50 = vld [vmem:[%s2 + $0x28] sm:$0xff]
  %v51 = vld [vmem:[%s2 + $0x30] sm:$0xff]
  %v52 = vld [vmem:[%s2 + $0x38] sm:$0xff]
  %v53 = vld [vmem:[%s2 + $0x40] sm:$0xff]
  %v54 = vld [vmem:[%s2 + $0x48] sm:$0xff]
  %v55 = vld [vmem:[%s2 + $0x50] sm:$0xff]
  %v56 = vld [vmem:[%s2 + $0x58] sm:$0xff]
  %v57 = vld [vmem:[%s2 + $0x60] sm:$0xff]
  %v58 = vld [vmem:[%s2 + $0x68] sm:$0xff]
  %v59 = vld [vmem:[%s2 + $0x70] sm:$0xff]
  %v60 = vld [vmem:[%s2 + $0x78] sm:$0xff]
  %v61 = vld [vmem:[%s2 + $0x80] sm:$0xff]
  %v62 = vld [vmem:[%s2 + $0x88] sm:$0xff]
  %v63 = vld [vmem:[%s2 + $0x90] sm:$0xff]
  %v64 = vld [vmem:[%s2 + $0x98] sm:$0xff]
  %v65 = vld [vmem:[%s2 + $0xa0] sm:$0xff]
  %v66 = vld [vmem:[%s2 + $0xa8] sm:$0xff]
  %v67 = vld [vmem:[%s2 + $0xb0] sm:$0xff]
  %v68 = vld [vmem:[%s2 + $0xb8] sm:$0xff]
  %v69 = vld [vmem:[%s2 + $0xc0] sm:$0xff]
  %v70 = vld [vmem:[%s2 + $0xc8] sm:$0xff]
  %v71 = vld [vmem:[%s2 + $0xd0] sm:$0xff]
  %v72 = vld [vmem:[%s2 + $0xd8] sm:$0xff]
  %v73 = vld [vmem:[%s2 + $0xe0] sm:$0xff]
  %v74 = vld [vmem:[%s2 + $0xe8] sm:$0xff]
  %v75 = vld [vmem:[%s2 + $0xf0] sm:$0xff]
  %v76 = vld [vmem:[%s2 + $0xf8] sm:$0xff]
  %v77 = vld [vmem:[%s0] sm:$0xff]
  %v78 = vld [vmem:[%s0 + $0x8] sm:$0xff]
  %v79 = vld [vmem:[%s0 + $0x10] sm:$0xff]
  %v80 = vld [vmem:[%s0 + $0x18] sm:$0xff]
  %v81 = vld [vmem:[%s0 + $0x20] sm:$0xff]
  %v82 = vld [vmem:[%s0 + $0x28] sm:$0xff]
  %v83 = vld [vmem:[%s0 + $0x30] sm:$0xff]
  %v84 = vld [vmem:[%s0 + $0x38] sm:$0xff]
  %v85 = vld [vmem:[%s0 + $0x40] sm:$0xff]
  %v86 = vld [vmem:[%s0 + $0x48] sm:$0xff]
  %v87 = vld [vmem:[%s0 + $0x50] sm:$0xff]
  %v88 = vld [vmem:[%s0 + $0x58] sm:$0xff]
  %v89 = vld [vmem:[%s0 + $0x60] sm:$0xff]
  %v90 = vld [vmem:[%s0 + $0x68] sm:$0xff]
  %v91 = vld [vmem:[%s0 + $0x70] sm:$0xff]
  %v92 = vld [vmem:[%s0 + $0x78] sm:$0xff]
  %v93 = vld [vmem:[%s0 + $0x80] sm:$0xff]
  %v94 = vld [vmem:[%s0 + $0x88] sm:$0xff]
  %v95 = vld [vmem:[%s0 + $0x90] sm:$0xff]
  %v96 = vld [vmem:[%s0 + $0x98] sm:$0xff]
  %v97 = vld [vmem:[%s0 + $0xa0] sm:$0xff]
  %v98 = vld [vmem:[%s0 + $0xa8] sm:$0xff]
  %v99 = vld [vmem:[%s0 + $0xb0] sm:$0xff]
  %v100 = vld [vmem:[%s0 + $0xb8] sm:$0xff]
  %v101 = vld [vmem:[%s0 + $0xc0] sm:$0xff]
  %v102 = vld [vmem:[%s0 + $0xc8] sm:$0xff]
  %v103 = vld [vmem:[%s0 + $0xd0] sm:$0xff]
  %v104 = vld [vmem:[%s0 + $0xd8] sm:$0xff]
  %v105 = vld [vmem:[%s0 + $0xe0] sm:$0xff]
  %v106 = vld [vmem:[%s0 + $0xe8] sm:$0xff]
  %v107 = vld [vmem:[%s0 + $0xf0] sm:$0xff]
  %v108 = vld [vmem:[%s0 + $0xf8] sm:$0xff]
  %110 = vset.pattern.permute.xlu0 0
  %111 = vperm.xlu0 %110, %v45
  %v112 = vpop.permute.xlu0 %111
  %115 = vset.pattern.permute.xlu0 0
  %116 = vperm.xlu0 %115, %v46
  %v117 = vpop.permute.xlu0 %116
  %120 = vset.pattern.permute.xlu0 0
  %121 = vperm.xlu0 %120, %v47
  %v122 = vpop.permute.xlu0 %121
  %125 = vset.pattern.permute.xlu0 0
  %126 = vperm.xlu0 %125, %v48
  %v127 = vpop.permute.xlu0 %126
  %130 = vset.pattern.permute.xlu0 0
  %131 = vperm.xlu0 %130, %v49
  %v132 = vpop.permute.xlu0 %131
  %135 = vset.pattern.permute.xlu0 0
  %136 = vperm.xlu0 %135, %v50
  %v137 = vpop.permute.xlu0 %136
  %140 = vset.pattern.permute.xlu0 0
  %141 = vperm.xlu0 %140, %v51
  %v142 = vpop.permute.xlu0 %141
  %145 = vset.pattern.permute.xlu0 0
  %146 = vperm.xlu0 %145, %v52
  %v147 = vpop.permute.xlu0 %146
  %150 = vset.pattern.permute.xlu0 0
  %151 = vperm.xlu0 %150, %v53
  %v152 = vpop.permute.xlu0 %151
  %155 = vset.pattern.permute.xlu0 0
  %156 = vperm.xlu0 %155, %v54
  %v157 = vpop.permute.xlu0 %156
  %160 = vset.pattern.permute.xlu0 0
  %161 = vperm.xlu0 %160, %v55
  %v162 = vpop.permute.xlu0 %161
  %165 = vset.pattern.permute.xlu0 0
  %166 = vperm.xlu0 %165, %v56
  %v167 = vpop.permute.xlu0 %166
  %170 = vset.pattern.permute.xlu0 0
  %171 = vperm.xlu0 %170, %v57
  %v172 = vpop.permute.xlu0 %171
  %175 = vset.pattern.permute.xlu0 0
  %176 = vperm.xlu0 %175, %v58
  %v177 = vpop.permute.xlu0 %176
  %180 = vset.pattern.permute.xlu0 0
  %181 = vperm.xlu0 %180, %v59
  %v182 = vpop.permute.xlu0 %181
  %185 = vset.pattern.permute.xlu0 0
  %186 = vperm.xlu0 %185, %v60
  %v187 = vpop.permute.xlu0 %186
  %190 = vset.pattern.permute.xlu0 0
  %191 = vperm.xlu0 %190, %v61
  %v192 = vpop.permute.xlu0 %191
  %195 = vset.pattern.permute.xlu0 0
  %196 = vperm.xlu0 %195, %v62
  %v197 = vpop.permute.xlu0 %196
  %200 = vset.pattern.permute.xlu0 0
  %201 = vperm.xlu0 %200, %v63
  %v202 = vpop.permute.xlu0 %201
  %205 = vset.pattern.permute.xlu0 0
  %206 = vperm.xlu0 %205, %v64
  %v207 = vpop.permute.xlu0 %206
  %210 = vset.pattern.permute.xlu0 0
  %211 = vperm.xlu0 %210, %v65
  %v212 = vpop.permute.xlu0 %211
  %215 = vset.pattern.permute.xlu0 0
  %216 = vperm.xlu0 %215, %v66
  %v217 = vpop.permute.xlu0 %216
  %220 = vset.pattern.permute.xlu0 0
  %221 = vperm.xlu0 %220, %v67
  %v222 = vpop.permute.xlu0 %221
  %225 = vset.pattern.permute.xlu0 0
  %226 = vperm.xlu0 %225, %v68
  %v227 = vpop.permute.xlu0 %226
  %230 = vset.pattern.permute.xlu0 0
  %231 = vperm.xlu0 %230, %v69
  %v232 = vpop.permute.xlu0 %231
  %235 = vset.pattern.permute.xlu0 0
  %236 = vperm.xlu0 %235, %v70
  %v237 = vpop.permute.xlu0 %236
  %240 = vset.pattern.permute.xlu0 0
  %241 = vperm.xlu0 %240, %v71
  %v242 = vpop.permute.xlu0 %241
  %245 = vset.pattern.permute.xlu0 0
  %246 = vperm.xlu0 %245, %v72
  %v247 = vpop.permute.xlu0 %246
  %250 = vset.pattern.permute.xlu0 0
  %251 = vperm.xlu0 %250, %v73
  %v252 = vpop.permute.xlu0 %251
  %255 = vset.pattern.permute.xlu0 0
  %256 = vperm.xlu0 %255, %v74
  %v257 = vpop.permute.xlu0 %256
  %260 = vset.pattern.permute.xlu0 0
  %261 = vperm.xlu0 %260, %v75
  %v262 = vpop.permute.xlu0 %261
  %265 = vset.pattern.permute.xlu0 0
  %266 = vperm.xlu0 %265, %v76
  %v267 = vpop.permute.xlu0 %266
  %v269 = vmul.f32 %v112, %v77
  %v270 = vmul.f32 %v117, %v78
  %v271 = vmul.f32 %v122, %v79
  %v272 = vmul.f32 %v127, %v80
  %v273 = vmul.f32 %v132, %v81
  %v274 = vmul.f32 %v137, %v82
  %v275 = vmul.f32 %v142, %v83
  %v276 = vmul.f32 %v147, %v84
  %v277 = vmul.f32 %v152, %v85
  %v278 = vmul.f32 %v157, %v86
  %v279 = vmul.f32 %v162, %v87
  %v280 = vmul.f32 %v167, %v88
  %v281 = vmul.f32 %v172, %v89
  %v282 = vmul.f32 %v177, %v90
  %v283 = vmul.f32 %v182, %v91
  %v284 = vmul.f32 %v187, %v92
  %v285 = vmul.f32 %v192, %v93
  %v286 = vmul.f32 %v197, %v94
  %v287 = vmul.f32 %v202, %v95
  %v288 = vmul.f32 %v207, %v96
  %v289 = vmul.f32 %v212, %v97
  %v290 = vmul.f32 %v217, %v98
  %v291 = vmul.f32 %v222, %v99
  %v292 = vmul.f32 %v227, %v100
  %v293 = vmul.f32 %v232, %v101
  %v294 = vmul.f32 %v237, %v102
  %v295 = vmul.f32 %v242, %v103
  %v296 = vmul.f32 %v247, %v104
  %v297 = vmul.f32 %v252, %v105
  %v298 = vmul.f32 %v257, %v106
  %v299 = vmul.f32 %v262, %v107
  %v300 = vmul.f32 %v267, %v108
  %v301 = vld [vmem:[%s3] sm:$0xff]
  %v302 = vld [vmem:[%s3 + $0x8] sm:$0xff]
  %v303 = vld [vmem:[%s3 + $0x10] sm:$0xff]
  %v304 = vld [vmem:[%s3 + $0x18] sm:$0xff]
  %v305 = vld [vmem:[%s3 + $0x20] sm:$0xff]
  %v306 = vld [vmem:[%s3 + $0x28] sm:$0xff]
  %v307 = vld [vmem:[%s3 + $0x30] sm:$0xff]
  %v308 = vld [vmem:[%s3 + $0x38] sm:$0xff]
  %v309 = vld [vmem:[%s3 + $0x40] sm:$0xff]
  %v310 = vld [vmem:[%s3 + $0x48] sm:$0xff]
  %v311 = vld [vmem:[%s3 + $0x50] sm:$0xff]
  %v312 = vld [vmem:[%s3 + $0x58] sm:$0xff]
  %v313 = vld [vmem:[%s3 + $0x60] sm:$0xff]
  %v314 = vld [vmem:[%s3 + $0x68] sm:$0xff]
  %v315 = vld [vmem:[%s3 + $0x70] sm:$0xff]
  %v316 = vld [vmem:[%s3 + $0x78] sm:$0xff]
  %v317 = vld [vmem:[%s3 + $0x80] sm:$0xff]
  %v318 = vld [vmem:[%s3 + $0x88] sm:$0xff]
  %v319 = vld [vmem:[%s3 + $0x90] sm:$0xff]
  %v320 = vld [vmem:[%s3 + $0x98] sm:$0xff]
  %v321 = vld [vmem:[%s3 + $0xa0] sm:$0xff]
  %v322 = vld [vmem:[%s3 + $0xa8] sm:$0xff]
  %v323 = vld [vmem:[%s3 + $0xb0] sm:$0xff]
  %v324 = vld [vmem:[%s3 + $0xb8] sm:$0xff]
  %v325 = vld [vmem:[%s3 + $0xc0] sm:$0xff]
  %v326 = vld [vmem:[%s3 + $0xc8] sm:$0xff]
  %v327 = vld [vmem:[%s3 + $0xd0] sm:$0xff]
  %v328 = vld [vmem:[%s3 + $0xd8] sm:$0xff]
  %v329 = vld [vmem:[%s3 + $0xe0] sm:$0xff]
  %v330 = vld [vmem:[%s3 + $0xe8] sm:$0xff]
  %v331 = vld [vmem:[%s3 + $0xf0] sm:$0xff]
  %v332 = vld [vmem:[%s3 + $0xf8] sm:$0xff]
  %v333 = vld [vmem:[%s1] sm:$0xff]
  %v334 = vld [vmem:[%s1 + $0x8] sm:$0xff]
  %v335 = vld [vmem:[%s1 + $0x10] sm:$0xff]
  %v336 = vld [vmem:[%s1 + $0x18] sm:$0xff]
  %v337 = vld [vmem:[%s1 + $0x20] sm:$0xff]
  %v338 = vld [vmem:[%s1 + $0x28] sm:$0xff]
  %v339 = vld [vmem:[%s1 + $0x30] sm:$0xff]
  %v340 = vld [vmem:[%s1 + $0x38] sm:$0xff]
  %v341 = vld [vmem:[%s1 + $0x40] sm:$0xff]
  %v342 = vld [vmem:[%s1 + $0x48] sm:$0xff]
  %v343 = vld [vmem:[%s1 + $0x50] sm:$0xff]
  %v344 = vld [vmem:[%s1 + $0x58] sm:$0xff]
  %v345 = vld [vmem:[%s1 + $0x60] sm:$0xff]
  %v346 = vld [vmem:[%s1 + $0x68] sm:$0xff]
  %v347 = vld [vmem:[%s1 + $0x70] sm:$0xff]
  %v348 = vld [vmem:[%s1 + $0x78] sm:$0xff]
  %v349 = vld [vmem:[%s1 + $0x80] sm:$0xff]
  %v350 = vld [vmem:[%s1 + $0x88] sm:$0xff]
  %v351 = vld [vmem:[%s1 + $0x90] sm:$0xff]
  %v352 = vld [vmem:[%s1 + $0x98] sm:$0xff]
  %v353 = vld [vmem:[%s1 + $0xa0] sm:$0xff]
  %v354 = vld [vmem:[%s1 + $0xa8] sm:$0xff]
  %v355 = vld [vmem:[%s1 + $0xb0] sm:$0xff]
  %v356 = vld [vmem:[%s1 + $0xb8] sm:$0xff]
  %v357 = vld [vmem:[%s1 + $0xc0] sm:$0xff]
  %v358 = vld [vmem:[%s1 + $0xc8] sm:$0xff]
  %v359 = vld [vmem:[%s1 + $0xd0] sm:$0xff]
  %v360 = vld [vmem:[%s1 + $0xd8] sm:$0xff]
  %v361 = vld [vmem:[%s1 + $0xe0] sm:$0xff]
  %v362 = vld [vmem:[%s1 + $0xe8] sm:$0xff]
  %v363 = vld [vmem:[%s1 + $0xf0] sm:$0xff]
  %v364 = vld [vmem:[%s1 + $0xf8] sm:$0xff]
  %366 = vset.pattern.permute.xlu0 0
  %367 = vperm.xlu0 %366, %v301
  %v368 = vpop.permute.xlu0 %367
  %371 = vset.pattern.permute.xlu0 0
  %372 = vperm.xlu0 %371, %v302
  %v373 = vpop.permute.xlu0 %372
  %376 = vset.pattern.permute.xlu0 0
  %377 = vperm.xlu0 %376, %v303
  %v378 = vpop.permute.xlu0 %377
  %381 = vset.pattern.permute.xlu0 0
  %382 = vperm.xlu0 %381, %v304
  %v383 = vpop.permute.xlu0 %382
  %386 = vset.pattern.permute.xlu0 0
  %387 = vperm.xlu0 %386, %v305
  %v388 = vpop.permute.xlu0 %387
  %391 = vset.pattern.permute.xlu0 0
  %392 = vperm.xlu0 %391, %v306
  %v393 = vpop.permute.xlu0 %392
  %396 = vset.pattern.permute.xlu0 0
  %397 = vperm.xlu0 %396, %v307
  %v398 = vpop.permute.xlu0 %397
  %401 = vset.pattern.permute.xlu0 0
  %402 = vperm.xlu0 %401, %v308
  %v403 = vpop.permute.xlu0 %402
  %406 = vset.pattern.permute.xlu0 0
  %407 = vperm.xlu0 %406, %v309
  %v408 = vpop.permute.xlu0 %407
  %411 = vset.pattern.permute.xlu0 0
  %412 = vperm.xlu0 %411, %v310
  %v413 = vpop.permute.xlu0 %412
  %416 = vset.pattern.permute.xlu0 0
  %417 = vperm.xlu0 %416, %v311
  %v418 = vpop.permute.xlu0 %417
  %421 = vset.pattern.permute.xlu0 0
  %422 = vperm.xlu0 %421, %v312
  %v423 = vpop.permute.xlu0 %422
  %426 = vset.pattern.permute.xlu0 0
  %427 = vperm.xlu0 %426, %v313
  %v428 = vpop.permute.xlu0 %427
  %431 = vset.pattern.permute.xlu0 0
  %432 = vperm.xlu0 %431, %v314
  %v433 = vpop.permute.xlu0 %432
  %436 = vset.pattern.permute.xlu0 0
  %437 = vperm.xlu0 %436, %v315
  %v438 = vpop.permute.xlu0 %437
  %441 = vset.pattern.permute.xlu0 0
  %442 = vperm.xlu0 %441, %v316
  %v443 = vpop.permute.xlu0 %442
  %446 = vset.pattern.permute.xlu0 0
  %447 = vperm.xlu0 %446, %v317
  %v448 = vpop.permute.xlu0 %447
  %451 = vset.pattern.permute.xlu0 0
  %452 = vperm.xlu0 %451, %v318
  %v453 = vpop.permute.xlu0 %452
  %456 = vset.pattern.permute.xlu0 0
  %457 = vperm.xlu0 %456, %v319
  %v458 = vpop.permute.xlu0 %457
  %461 = vset.pattern.permute.xlu0 0
  %462 = vperm.xlu0 %461, %v320
  %v463 = vpop.permute.xlu0 %462
  %466 = vset.pattern.permute.xlu0 0
  %467 = vperm.xlu0 %466, %v321
  %v468 = vpop.permute.xlu0 %467
  %471 = vset.pattern.permute.xlu0 0
  %472 = vperm.xlu0 %471, %v322
  %v473 = vpop.permute.xlu0 %472
  %476 = vset.pattern.permute.xlu0 0
  %477 = vperm.xlu0 %476, %v323
  %v478 = vpop.permute.xlu0 %477
  %481 = vset.pattern.permute.xlu0 0
  %482 = vperm.xlu0 %481, %v324
  %v483 = vpop.permute.xlu0 %482
  %486 = vset.pattern.permute.xlu0 0
  %487 = vperm.xlu0 %486, %v325
  %v488 = vpop.permute.xlu0 %487
  %491 = vset.pattern.permute.xlu0 0
  %492 = vperm.xlu0 %491, %v326
  %v493 = vpop.permute.xlu0 %492
  %496 = vset.pattern.permute.xlu0 0
  %497 = vperm.xlu0 %496, %v327
  %v498 = vpop.permute.xlu0 %497
  %501 = vset.pattern.permute.xlu0 0
  %502 = vperm.xlu0 %501, %v328
  %v503 = vpop.permute.xlu0 %502
  %506 = vset.pattern.permute.xlu0 0
  %507 = vperm.xlu0 %506, %v329
  %v508 = vpop.permute.xlu0 %507
  %511 = vset.pattern.permute.xlu0 0
  %512 = vperm.xlu0 %511, %v330
  %v513 = vpop.permute.xlu0 %512
  %516 = vset.pattern.permute.xlu0 0
  %517 = vperm.xlu0 %516, %v331
  %v518 = vpop.permute.xlu0 %517
  %521 = vset.pattern.permute.xlu0 0
  %522 = vperm.xlu0 %521, %v332
  %v523 = vpop.permute.xlu0 %522
  %v525 = vmul.f32 %v368, %v333
  %v526 = vmul.f32 %v373, %v334
  %v527 = vmul.f32 %v378, %v335
  %v528 = vmul.f32 %v383, %v336
  %v529 = vmul.f32 %v388, %v337
  %v530 = vmul.f32 %v393, %v338
  %v531 = vmul.f32 %v398, %v339
  %v532 = vmul.f32 %v403, %v340
  %v533 = vmul.f32 %v408, %v341
  %v534 = vmul.f32 %v413, %v342
  %v535 = vmul.f32 %v418, %v343
  %v536 = vmul.f32 %v423, %v344
  %v537 = vmul.f32 %v428, %v345
  %v538 = vmul.f32 %v433, %v346
  %v539 = vmul.f32 %v438, %v347
  %v540 = vmul.f32 %v443, %v348
  %v541 = vmul.f32 %v448, %v349
  %v542 = vmul.f32 %v453, %v350
  %v543 = vmul.f32 %v458, %v351
  %v544 = vmul.f32 %v463, %v352
  %v545 = vmul.f32 %v468, %v353
  %v546 = vmul.f32 %v473, %v354
  %v547 = vmul.f32 %v478, %v355
  %v548 = vmul.f32 %v483, %v356
  %v549 = vmul.f32 %v488, %v357
  %v550 = vmul.f32 %v493, %v358
  %v551 = vmul.f32 %v498, %v359
  %v552 = vmul.f32 %v503, %v360
  %v553 = vmul.f32 %v508, %v361
  %v554 = vmul.f32 %v513, %v362
  %v555 = vmul.f32 %v518, %v363
  %v556 = vmul.f32 %v523, %v364
  %v557 = vadd.f32 %v269, %v525
  %v558 = vadd.f32 %v270, %v526
  %v559 = vadd.f32 %v271, %v527
  %v560 = vadd.f32 %v272, %v528
  %v561 = vadd.f32 %v273, %v529
  %v562 = vadd.f32 %v274, %v530
  %v563 = vadd.f32 %v275, %v531
  %v564 = vadd.f32 %v276, %v532
  %v565 = vadd.f32 %v277, %v533
  %v566 = vadd.f32 %v278, %v534
  %v567 = vadd.f32 %v279, %v535
  %v568 = vadd.f32 %v280, %v536
  %v569 = vadd.f32 %v281, %v537
  %v570 = vadd.f32 %v282, %v538
  %v571 = vadd.f32 %v283, %v539
  %v572 = vadd.f32 %v284, %v540
  %v573 = vadd.f32 %v285, %v541
  %v574 = vadd.f32 %v286, %v542
  %v575 = vadd.f32 %v287, %v543
  %v576 = vadd.f32 %v288, %v544
  %v577 = vadd.f32 %v289, %v545
  %v578 = vadd.f32 %v290, %v546
  %v579 = vadd.f32 %v291, %v547
  %v580 = vadd.f32 %v292, %v548
  %v581 = vadd.f32 %v293, %v549
  %v582 = vadd.f32 %v294, %v550
  %v583 = vadd.f32 %v295, %v551
  %v584 = vadd.f32 %v296, %v552
  %v585 = vadd.f32 %v297, %v553
  %v586 = vadd.f32 %v298, %v554
  %v587 = vadd.f32 %v299, %v555
  %v588 = vadd.f32 %v300, %v556
  %v589 = vpack.c.bf16 %v558, %v557
  %v590 = vpack.c.bf16 %v560, %v559
  %v591 = vpack.c.bf16 %v562, %v561
  %v592 = vpack.c.bf16 %v564, %v563
  %v593 = vpack.c.bf16 %v566, %v565
  %v594 = vpack.c.bf16 %v568, %v567
  %v595 = vpack.c.bf16 %v570, %v569
  %v596 = vpack.c.bf16 %v572, %v571
  %v597 = vpack.c.bf16 %v574, %v573
  %v598 = vpack.c.bf16 %v576, %v575
  %v599 = vpack.c.bf16 %v578, %v577
  %v600 = vpack.c.bf16 %v580, %v579
  %v601 = vpack.c.bf16 %v582, %v581
  %v602 = vpack.c.bf16 %v584, %v583
  %v603 = vpack.c.bf16 %v586, %v585
  %v604 = vpack.c.bf16 %v588, %v587
  %v605 = vld [vmem:[%s5] sm:$0xf]
  %v606 = vld [vmem:[%s5 + $0x4] sm:$0xf]
  %v607 = vld [vmem:[%s5 + $0x8] sm:$0xf]
  %v608 = vld [vmem:[%s5 + $0xc] sm:$0xf]
  %v609 = vld [vmem:[%s5 + $0x10] sm:$0xf]
  %v610 = vld [vmem:[%s5 + $0x14] sm:$0xf]
  %v611 = vld [vmem:[%s5 + $0x18] sm:$0xf]
  %v612 = vld [vmem:[%s5 + $0x1c] sm:$0xf]
  %v613 = vld [vmem:[%s5 + $0x20] sm:$0xf]
  %v614 = vld [vmem:[%s5 + $0x24] sm:$0xf]
  %v615 = vld [vmem:[%s5 + $0x28] sm:$0xf]
  %v616 = vld [vmem:[%s5 + $0x2c] sm:$0xf]
  %v617 = vld [vmem:[%s5 + $0x30] sm:$0xf]
  %v618 = vld [vmem:[%s5 + $0x34] sm:$0xf]
  %v619 = vld [vmem:[%s5 + $0x38] sm:$0xf]
  %v620 = vld [vmem:[%s5 + $0x3c] sm:$0xf]
  %v621 = vld [vmem:[%s4] sm:$0xff]
  %v622 = vld [vmem:[%s4 + $0x8] sm:$0xff]
  %v623 = vld [vmem:[%s4 + $0x10] sm:$0xff]
  %v624 = vld [vmem:[%s4 + $0x18] sm:$0xff]
  %v625 = vld [vmem:[%s4 + $0x20] sm:$0xff]
  %v626 = vld [vmem:[%s4 + $0x28] sm:$0xff]
  %v627 = vld [vmem:[%s4 + $0x30] sm:$0xff]
  %v628 = vld [vmem:[%s4 + $0x38] sm:$0xff]
  %v629 = vld [vmem:[%s4 + $0x40] sm:$0xff]
  %v630 = vld [vmem:[%s4 + $0x48] sm:$0xff]
  %v631 = vld [vmem:[%s4 + $0x50] sm:$0xff]
  %v632 = vld [vmem:[%s4 + $0x58] sm:$0xff]
  %v633 = vld [vmem:[%s4 + $0x60] sm:$0xff]
  %v634 = vld [vmem:[%s4 + $0x68] sm:$0xff]
  %v635 = vld [vmem:[%s4 + $0x70] sm:$0xff]
  %v636 = vld [vmem:[%s4 + $0x78] sm:$0xff]
  %v637 = vld [vmem:[%s4 + $0x80] sm:$0xff]
  %v638 = vld [vmem:[%s4 + $0x88] sm:$0xff]
  %v639 = vld [vmem:[%s4 + $0x90] sm:$0xff]
  %v640 = vld [vmem:[%s4 + $0x98] sm:$0xff]
  %v641 = vld [vmem:[%s4 + $0xa0] sm:$0xff]
  %v642 = vld [vmem:[%s4 + $0xa8] sm:$0xff]
  %v643 = vld [vmem:[%s4 + $0xb0] sm:$0xff]
  %v644 = vld [vmem:[%s4 + $0xb8] sm:$0xff]
  %v645 = vld [vmem:[%s4 + $0xc0] sm:$0xff]
  %v646 = vld [vmem:[%s4 + $0xc8] sm:$0xff]
  %v647 = vld [vmem:[%s4 + $0xd0] sm:$0xff]
  %v648 = vld [vmem:[%s4 + $0xd8] sm:$0xff]
  %v649 = vld [vmem:[%s4 + $0xe0] sm:$0xff]
  %v650 = vld [vmem:[%s4 + $0xe8] sm:$0xff]
  %v651 = vld [vmem:[%s4 + $0xf0] sm:$0xff]
  %v652 = vld [vmem:[%s4 + $0xf8] sm:$0xff]
  %v669 = vunpack.c.l.b16 %v605
  %v670 = vunpack.c.l.b16 %v606
  %v671 = vunpack.c.l.b16 %v607
  %v672 = vunpack.c.l.b16 %v608
  %v673 = vunpack.c.l.b16 %v609
  %v674 = vunpack.c.l.b16 %v610
  %v675 = vunpack.c.l.b16 %v611
  %v676 = vunpack.c.l.b16 %v612
  %v677 = vunpack.c.l.b16 %v613
  %v678 = vunpack.c.l.b16 %v614
  %v679 = vunpack.c.l.b16 %v615
  %v680 = vunpack.c.l.b16 %v616
  %v681 = vunpack.c.l.b16 %v617
  %v682 = vunpack.c.l.b16 %v618
  %v683 = vunpack.c.l.b16 %v619
  %v684 = vunpack.c.l.b16 %v620
  %v685 = vpack.c.b16 %v670, %v669
  %v686 = vpack.c.b16 %v672, %v671
  %v687 = vpack.c.b16 %v674, %v673
  %v688 = vpack.c.b16 %v676, %v675
  %v689 = vpack.c.b16 %v678, %v677
  %v690 = vpack.c.b16 %v680, %v679
  %v691 = vpack.c.b16 %v682, %v681
  %v692 = vpack.c.b16 %v684, %v683
  %701 = vmatprep.subr.bf16.mxu0 0
  %702 = vmatpush1.bf16.msra.mxu0 %v692
  %703 = vmatprep.subr.bf16.mxu0 0
  %704 = vmatpush1.bf16.msra.mxu0 %v691
  %705 = vmatprep.subr.bf16.mxu0 0
  %706 = vmatpush1.bf16.msra.mxu0 %v690
  %707 = vmatprep.subr.bf16.mxu0 0
  %708 = vmatpush1.bf16.msra.mxu0 %v689
  %709 = vmatprep.subr.bf16.mxu0 0
  %710 = vmatpush1.bf16.msra.mxu0 %v688
  %711 = vmatprep.subr.bf16.mxu0 0
  %712 = vmatpush1.bf16.msra.mxu0 %v687
  %713 = vmatprep.subr.bf16.mxu0 0
  %714 = vmatpush1.bf16.msra.mxu0 %v686
  %715 = vmatprep.subr.bf16.mxu0 0
  %716 = vmatpush1.bf16.msra.mxu0 %v685
  %717 = vmatprep.subr.bf16.mxu0 0
  %718 = vmatpush2.bf16.msra.mxu0 0
  %719 = vmatprep.subr.bf16.mxu0 0
  %720 = vmatpush2.bf16.msra.mxu0 0
  %721 = vmatprep.subr.bf16.mxu0 0
  %722 = vmatpush2.bf16.msra.mxu0 0
  %723 = vmatprep.subr.bf16.mxu0 0
  %724 = vmatpush2.bf16.msra.mxu0 0
  %725 = vmatprep.subr.bf16.mxu0 0
  %726 = vmatpush2.bf16.msra.mxu0 0
  %727 = vmatprep.subr.bf16.mxu0 0
  %728 = vmatpush2.bf16.msra.mxu0 0
  %729 = vmatprep.subr.bf16.mxu0 0
  %730 = vmatpush2.bf16.msra.mxu0 0
  %731 = vmatprep.subr.bf16.mxu0 0
  %732 = vmatpush2.bf16.msra.mxu0 0
  %733 = vmatprep.mubr.bf16.mxu0 0
  %734 = vmatmul.mubr.bf16.gmra.mxu0 %v589
  %v735 = vpop.f32.mrf.mxu0
  %v736 = vadd.f32 %v621, %v735
  %v737 = vpop.f32.mrf.mxu0
  %v738 = vpop.f32.mrf.mxu0
  %v739 = vadd.f32 %v622, %v738
  %v740 = vpop.f32.mrf.mxu0
  %741 = vmatprep.mubr.bf16.mxu0 0
  %742 = vmatmul.mubr.bf16.gmra.mxu0 %v590
  %v743 = vpop.f32.mrf.mxu0
  %v744 = vadd.f32 %v623, %v743
  %v745 = vpop.f32.mrf.mxu0
  %v746 = vpop.f32.mrf.mxu0
  %v747 = vadd.f32 %v624, %v746
  %v748 = vpop.f32.mrf.mxu0
  %749 = vmatprep.mubr.bf16.mxu0 0
  %750 = vmatmul.mubr.bf16.gmra.mxu0 %v591
  %v751 = vpop.f32.mrf.mxu0
  %v752 = vadd.f32 %v625, %v751
  %v753 = vpop.f32.mrf.mxu0
  %v754 = vpop.f32.mrf.mxu0
  %v755 = vadd.f32 %v626, %v754
  %v756 = vpop.f32.mrf.mxu0
  %757 = vmatprep.mubr.bf16.mxu0 0
  %758 = vmatmul.mubr.bf16.gmra.mxu0 %v592
  %v759 = vpop.f32.mrf.mxu0
  %v760 = vadd.f32 %v627, %v759
  %v761 = vpop.f32.mrf.mxu0
  %v762 = vpop.f32.mrf.mxu0
  %v763 = vadd.f32 %v628, %v762
  %v764 = vpop.f32.mrf.mxu0
  %765 = vmatprep.mubr.bf16.mxu0 0
  %766 = vmatmul.mubr.bf16.gmra.mxu0 %v593
  %v767 = vpop.f32.mrf.mxu0
  %v768 = vadd.f32 %v629, %v767
  %v769 = vpop.f32.mrf.mxu0
  %v770 = vpop.f32.mrf.mxu0
  %v771 = vadd.f32 %v630, %v770
  %v772 = vpop.f32.mrf.mxu0
  %773 = vmatprep.mubr.bf16.mxu0 0
  %774 = vmatmul.mubr.bf16.gmra.mxu0 %v594
  %v775 = vpop.f32.mrf.mxu0
  %v776 = vadd.f32 %v631, %v775
  %v777 = vpop.f32.mrf.mxu0
  %v778 = vpop.f32.mrf.mxu0
  %v779 = vadd.f32 %v632, %v778
  %v780 = vpop.f32.mrf.mxu0
  %781 = vmatprep.mubr.bf16.mxu0 0
  %782 = vmatmul.mubr.bf16.gmra.mxu0 %v595
  %v783 = vpop.f32.mrf.mxu0
  %v784 = vadd.f32 %v633, %v783
  %v785 = vpop.f32.mrf.mxu0
  %v786 = vpop.f32.mrf.mxu0
  %v787 = vadd.f32 %v634, %v786
  %v788 = vpop.f32.mrf.mxu0
  %789 = vmatprep.mubr.bf16.mxu0 0
  %790 = vmatmul.mubr.bf16.gmra.mxu0 %v596
  %v791 = vpop.f32.mrf.mxu0
  %v792 = vadd.f32 %v635, %v791
  %v793 = vpop.f32.mrf.mxu0
  %v794 = vpop.f32.mrf.mxu0
  %v795 = vadd.f32 %v636, %v794
  %v796 = vpop.f32.mrf.mxu0
  %797 = vmatprep.mubr.bf16.mxu0 0
  %798 = vmatmul.mubr.bf16.gmra.mxu0 %v597
  %v799 = vpop.f32.mrf.mxu0
  %v800 = vadd.f32 %v637, %v799
  %v801 = vpop.f32.mrf.mxu0
  %v802 = vpop.f32.mrf.mxu0
  %v803 = vadd.f32 %v638, %v802
  %v804 = vpop.f32.mrf.mxu0
  %805 = vmatprep.mubr.bf16.mxu0 0
  %806 = vmatmul.mubr.bf16.gmra.mxu0 %v598
  %v807 = vpop.f32.mrf.mxu0
  %v808 = vadd.f32 %v639, %v807
  %v809 = vpop.f32.mrf.mxu0
  %v810 = vpop.f32.mrf.mxu0
  %v811 = vadd.f32 %v640, %v810
  %v812 = vpop.f32.mrf.mxu0
  %813 = vmatprep.mubr.bf16.mxu0 0
  %814 = vmatmul.mubr.bf16.gmra.mxu0 %v599
  %v815 = vpop.f32.mrf.mxu0
  %v816 = vadd.f32 %v641, %v815
  %v817 = vpop.f32.mrf.mxu0
  %v818 = vpop.f32.mrf.mxu0
  %v819 = vadd.f32 %v642, %v818
  %v820 = vpop.f32.mrf.mxu0
  %821 = vmatprep.mubr.bf16.mxu0 0
  %822 = vmatmul.mubr.bf16.gmra.mxu0 %v600
  %v823 = vpop.f32.mrf.mxu0
  %v824 = vadd.f32 %v643, %v823
  %v825 = vpop.f32.mrf.mxu0
  %v826 = vpop.f32.mrf.mxu0
  %v827 = vadd.f32 %v644, %v826
  %v828 = vpop.f32.mrf.mxu0
  %829 = vmatprep.mubr.bf16.mxu0 0
  %830 = vmatmul.mubr.bf16.gmra.mxu0 %v601
  %v831 = vpop.f32.mrf.mxu0
  %v832 = vadd.f32 %v645, %v831
  %v833 = vpop.f32.mrf.mxu0
  %v834 = vpop.f32.mrf.mxu0
  %v835 = vadd.f32 %v646, %v834
  %v836 = vpop.f32.mrf.mxu0
  %837 = vmatprep.mubr.bf16.mxu0 0
  %838 = vmatmul.mubr.bf16.gmra.mxu0 %v602
  %v839 = vpop.f32.mrf.mxu0
  %v840 = vadd.f32 %v647, %v839
  %v841 = vpop.f32.mrf.mxu0
  %v842 = vpop.f32.mrf.mxu0
  %v843 = vadd.f32 %v648, %v842
  %v844 = vpop.f32.mrf.mxu0
  %845 = vmatprep.mubr.bf16.mxu0 0
  %846 = vmatmul.mubr.bf16.gmra.mxu0 %v603
  %v847 = vpop.f32.mrf.mxu0
  %v848 = vadd.f32 %v649, %v847
  %v849 = vpop.f32.mrf.mxu0
  %v850 = vpop.f32.mrf.mxu0
  %v851 = vadd.f32 %v650, %v850
  %v852 = vpop.f32.mrf.mxu0
  %853 = vmatprep.mubr.bf16.mxu0 0
  %854 = vmatmul.mubr.bf16.gmra.mxu0 %v604
  %v855 = vpop.f32.mrf.mxu0
  %v856 = vadd.f32 %v651, %v855
  %v857 = vpop.f32.mrf.mxu0
  %v858 = vpop.f32.mrf.mxu0
  %v859 = vadd.f32 %v652, %v858
  %v860 = vpop.f32.mrf.mxu0
  %861 = vdwg.mxu0
  %v862 = vld [vmem:[%s6] sm:$0x1]
  %v864 = vlaneseq
  %v865 = vshrl.u32 %v864, 7
  %v866 = vsub.s32 0, %v865
  %v867 = vrot.slane %v862, %v866
  %v869 = vadd.f32 %v736, %v867
  %v870 = vadd.f32 %v739, %v867
  %v871 = vadd.f32 %v744, %v867
  %v872 = vadd.f32 %v747, %v867
  %v873 = vadd.f32 %v752, %v867
  %v874 = vadd.f32 %v755, %v867
  %v875 = vadd.f32 %v760, %v867
  %v876 = vadd.f32 %v763, %v867
  %v877 = vadd.f32 %v768, %v867
  %v878 = vadd.f32 %v771, %v867
  %v879 = vadd.f32 %v776, %v867
  %v880 = vadd.f32 %v779, %v867
  %v881 = vadd.f32 %v784, %v867
  %v882 = vadd.f32 %v787, %v867
  %v883 = vadd.f32 %v792, %v867
  %v884 = vadd.f32 %v795, %v867
  %v885 = vadd.f32 %v800, %v867
  %v886 = vadd.f32 %v803, %v867
  %v887 = vadd.f32 %v808, %v867
  %v888 = vadd.f32 %v811, %v867
  %v889 = vadd.f32 %v816, %v867
  %v890 = vadd.f32 %v819, %v867
  %v891 = vadd.f32 %v824, %v867
  %v892 = vadd.f32 %v827, %v867
  %v893 = vadd.f32 %v832, %v867
  %v894 = vadd.f32 %v835, %v867
  %v895 = vadd.f32 %v840, %v867
  %v896 = vadd.f32 %v843, %v867
  %v897 = vadd.f32 %v848, %v867
  %v898 = vadd.f32 %v851, %v867
  %v899 = vadd.f32 %v856, %v867
  %v900 = vadd.f32 %v859, %v867
  %v901 = vmax.f32 %v869, 0.0
  %v902 = vmax.f32 %v870, 0.0
  %v903 = vmax.f32 %v871, 0.0
  %v904 = vmax.f32 %v872, 0.0
  %v905 = vmax.f32 %v873, 0.0
  %v906 = vmax.f32 %v874, 0.0
  %v907 = vmax.f32 %v875, 0.0
  %v908 = vmax.f32 %v876, 0.0
  %v909 = vmax.f32 %v877, 0.0
  %v910 = vmax.f32 %v878, 0.0
  %v911 = vmax.f32 %v879, 0.0
  %v912 = vmax.f32 %v880, 0.0
  %v913 = vmax.f32 %v881, 0.0
  %v914 = vmax.f32 %v882, 0.0
  %v915 = vmax.f32 %v883, 0.0
  %v916 = vmax.f32 %v884, 0.0
  %v917 = vmax.f32 %v885, 0.0
  %v918 = vmax.f32 %v886, 0.0
  %v919 = vmax.f32 %v887, 0.0
  %v920 = vmax.f32 %v888, 0.0
  %v921 = vmax.f32 %v889, 0.0
  %v922 = vmax.f32 %v890, 0.0
  %v923 = vmax.f32 %v891, 0.0
  %v924 = vmax.f32 %v892, 0.0
  %v925 = vmax.f32 %v893, 0.0
  %v926 = vmax.f32 %v894, 0.0
  %v927 = vmax.f32 %v895, 0.0
  %v928 = vmax.f32 %v896, 0.0
  %v929 = vmax.f32 %v897, 0.0
  %v930 = vmax.f32 %v898, 0.0
  %v931 = vmax.f32 %v899, 0.0
  %v932 = vmax.f32 %v900, 0.0
  %v933 = vpack.c.bf16 %v902, %v901
  %v934 = vpack.c.bf16 %v904, %v903
  %v935 = vpack.c.bf16 %v906, %v905
  %v936 = vpack.c.bf16 %v908, %v907
  %v937 = vpack.c.bf16 %v910, %v909
  %v938 = vpack.c.bf16 %v912, %v911
  %v939 = vpack.c.bf16 %v914, %v913
  %v940 = vpack.c.bf16 %v916, %v915
  %v941 = vpack.c.bf16 %v918, %v917
  %v942 = vpack.c.bf16 %v920, %v919
  %v943 = vpack.c.bf16 %v922, %v921
  %v944 = vpack.c.bf16 %v924, %v923
  %v945 = vpack.c.bf16 %v926, %v925
  %v946 = vpack.c.bf16 %v928, %v927
  %v947 = vpack.c.bf16 %v930, %v929
  %v948 = vpack.c.bf16 %v932, %v931
  %v949 = vld [vmem:[%s7] sm:$0xf]
  %v950 = vld [vmem:[%s7 + $0x4] sm:$0xf]
  %v951 = vld [vmem:[%s7 + $0x8] sm:$0xf]
  %v952 = vld [vmem:[%s7 + $0xc] sm:$0xf]
  %v953 = vld [vmem:[%s7 + $0x10] sm:$0xf]
  %v954 = vld [vmem:[%s7 + $0x14] sm:$0xf]
  %v955 = vld [vmem:[%s7 + $0x18] sm:$0xf]
  %v956 = vld [vmem:[%s7 + $0x1c] sm:$0xf]
  %v957 = vld [vmem:[%s7 + $0x20] sm:$0xf]
  %v958 = vld [vmem:[%s7 + $0x24] sm:$0xf]
  %v959 = vld [vmem:[%s7 + $0x28] sm:$0xf]
  %v960 = vld [vmem:[%s7 + $0x2c] sm:$0xf]
  %v961 = vld [vmem:[%s7 + $0x30] sm:$0xf]
  %v962 = vld [vmem:[%s7 + $0x34] sm:$0xf]
  %v963 = vld [vmem:[%s7 + $0x38] sm:$0xf]
  %v964 = vld [vmem:[%s7 + $0x3c] sm:$0xf]
  %v965 = vld [vmem:[%s8] sm:$0x1]
  %v967 = vlaneseq
  %v968 = vshrl.u32 %v967, 7
  %v969 = vsub.s32 0, %v968
  %v970 = vrot.slane %v965, %v969
  %v988 = vunpack.c.l.b16 %v949
  %v989 = vunpack.c.l.b16 %v950
  %v990 = vunpack.c.l.b16 %v951
  %v991 = vunpack.c.l.b16 %v952
  %v992 = vunpack.c.l.b16 %v953
  %v993 = vunpack.c.l.b16 %v954
  %v994 = vunpack.c.l.b16 %v955
  %v995 = vunpack.c.l.b16 %v956
  %v996 = vunpack.c.l.b16 %v957
  %v997 = vunpack.c.l.b16 %v958
  %v998 = vunpack.c.l.b16 %v959
  %v999 = vunpack.c.l.b16 %v960
  %v1000 = vunpack.c.l.b16 %v961
  %v1001 = vunpack.c.l.b16 %v962
  %v1002 = vunpack.c.l.b16 %v963
  %v1003 = vunpack.c.l.b16 %v964
  %v1004 = vpack.c.b16 %v989, %v988
  %v1005 = vpack.c.b16 %v991, %v990
  %v1006 = vpack.c.b16 %v993, %v992
  %v1007 = vpack.c.b16 %v995, %v994
  %v1008 = vpack.c.b16 %v997, %v996
  %v1009 = vpack.c.b16 %v999, %v998
  %v1010 = vpack.c.b16 %v1001, %v1000
  %v1011 = vpack.c.b16 %v1003, %v1002
  %1020 = vmatprep.subr.bf16.mxu0 0
  %1021 = vmatpush1.bf16.msra.mxu0 %v1011
  %1022 = vmatprep.subr.bf16.mxu0 0
  %1023 = vmatpush1.bf16.msra.mxu0 %v1010
  %1024 = vmatprep.subr.bf16.mxu0 0
  %1025 = vmatpush1.bf16.msra.mxu0 %v1009
  %1026 = vmatprep.subr.bf16.mxu0 0
  %1027 = vmatpush1.bf16.msra.mxu0 %v1008
  %1028 = vmatprep.subr.bf16.mxu0 0
  %1029 = vmatpush1.bf16.msra.mxu0 %v1007
  %1030 = vmatprep.subr.bf16.mxu0 0
  %1031 = vmatpush1.bf16.msra.mxu0 %v1006
  %1032 = vmatprep.subr.bf16.mxu0 0
  %1033 = vmatpush1.bf16.msra.mxu0 %v1005
  %1034 = vmatprep.subr.bf16.mxu0 0
  %1035 = vmatpush1.bf16.msra.mxu0 %v1004
  %1036 = vmatprep.subr.bf16.mxu0 0
  %1037 = vmatpush2.bf16.msra.mxu0 0
  %1038 = vmatprep.subr.bf16.mxu0 0
  %1039 = vmatpush2.bf16.msra.mxu0 0
  %1040 = vmatprep.subr.bf16.mxu0 0
  %1041 = vmatpush2.bf16.msra.mxu0 0
  %1042 = vmatprep.subr.bf16.mxu0 0
  %1043 = vmatpush2.bf16.msra.mxu0 0
  %1044 = vmatprep.subr.bf16.mxu0 0
  %1045 = vmatpush2.bf16.msra.mxu0 0
  %1046 = vmatprep.subr.bf16.mxu0 0
  %1047 = vmatpush2.bf16.msra.mxu0 0
  %1048 = vmatprep.subr.bf16.mxu0 0
  %1049 = vmatpush2.bf16.msra.mxu0 0
  %1050 = vmatprep.subr.bf16.mxu0 0
  %1051 = vmatpush2.bf16.msra.mxu0 0
  %1052 = vmatprep.mubr.bf16.mxu0 0
  %1053 = vmatmul.mubr.bf16.gmra.mxu0 %v933
  %v1054 = vpop.f32.mrf.mxu0
  %v1055 = vadd.f32 %v970, %v1054
  %v1056 = vpop.f32.mrf.mxu0
  %v1057 = vpop.f32.mrf.mxu0
  %v1058 = vadd.f32 %v970, %v1057
  %v1059 = vpop.f32.mrf.mxu0
  %1060 = vmatprep.mubr.bf16.mxu0 0
  %1061 = vmatmul.mubr.bf16.gmra.mxu0 %v934
  %v1062 = vpop.f32.mrf.mxu0
  %v1063 = vadd.f32 %v970, %v1062
  %v1064 = vpop.f32.mrf.mxu0
  %v1065 = vpop.f32.mrf.mxu0
  %v1066 = vadd.f32 %v970, %v1065
  %v1067 = vpop.f32.mrf.mxu0
  %1068 = vmatprep.mubr.bf16.mxu0 0
  %1069 = vmatmul.mubr.bf16.gmra.mxu0 %v935
  %v1070 = vpop.f32.mrf.mxu0
  %v1071 = vadd.f32 %v970, %v1070
  %v1072 = vpop.f32.mrf.mxu0
  %v1073 = vpop.f32.mrf.mxu0
  %v1074 = vadd.f32 %v970, %v1073
  %v1075 = vpop.f32.mrf.mxu0
  %1076 = vmatprep.mubr.bf16.mxu0 0
  %1077 = vmatmul.mubr.bf16.gmra.mxu0 %v936
  %v1078 = vpop.f32.mrf.mxu0
  %v1079 = vadd.f32 %v970, %v1078
  %v1080 = vpop.f32.mrf.mxu0
  %v1081 = vpop.f32.mrf.mxu0
  %v1082 = vadd.f32 %v970, %v1081
  %v1083 = vpop.f32.mrf.mxu0
  %1084 = vmatprep.mubr.bf16.mxu0 0
  %1085 = vmatmul.mubr.bf16.gmra.mxu0 %v937
  %v1086 = vpop.f32.mrf.mxu0
  %v1087 = vadd.f32 %v970, %v1086
  %v1088 = vpop.f32.mrf.mxu0
  %v1089 = vpop.f32.mrf.mxu0
  %v1090 = vadd.f32 %v970, %v1089
  %v1091 = vpop.f32.mrf.mxu0
  %1092 = vmatprep.mubr.bf16.mxu0 0
  %1093 = vmatmul.mubr.bf16.gmra.mxu0 %v938
  %v1094 = vpop.f32.mrf.mxu0
  %v1095 = vadd.f32 %v970, %v1094
  %v1096 = vpop.f32.mrf.mxu0
  %v1097 = vpop.f32.mrf.mxu0
  %v1098 = vadd.f32 %v970, %v1097
  %v1099 = vpop.f32.mrf.mxu0
  %1100 = vmatprep.mubr.bf16.mxu0 0
  %1101 = vmatmul.mubr.bf16.gmra.mxu0 %v939
  %v1102 = vpop.f32.mrf.mxu0
  %v1103 = vadd.f32 %v970, %v1102
  %v1104 = vpop.f32.mrf.mxu0
  %v1105 = vpop.f32.mrf.mxu0
  %v1106 = vadd.f32 %v970, %v1105
  %v1107 = vpop.f32.mrf.mxu0
  %1108 = vmatprep.mubr.bf16.mxu0 0
  %1109 = vmatmul.mubr.bf16.gmra.mxu0 %v940
  %v1110 = vpop.f32.mrf.mxu0
  %v1111 = vadd.f32 %v970, %v1110
  %v1112 = vpop.f32.mrf.mxu0
  %v1113 = vpop.f32.mrf.mxu0
  %v1114 = vadd.f32 %v970, %v1113
  %v1115 = vpop.f32.mrf.mxu0
  %1116 = vmatprep.mubr.bf16.mxu0 0
  %1117 = vmatmul.mubr.bf16.gmra.mxu0 %v941
  %v1118 = vpop.f32.mrf.mxu0
  %v1119 = vadd.f32 %v970, %v1118
  %v1120 = vpop.f32.mrf.mxu0
  %v1121 = vpop.f32.mrf.mxu0
  %v1122 = vadd.f32 %v970, %v1121
  %v1123 = vpop.f32.mrf.mxu0
  %1124 = vmatprep.mubr.bf16.mxu0 0
  %1125 = vmatmul.mubr.bf16.gmra.mxu0 %v942
  %v1126 = vpop.f32.mrf.mxu0
  %v1127 = vadd.f32 %v970, %v1126
  %v1128 = vpop.f32.mrf.mxu0
  %v1129 = vpop.f32.mrf.mxu0
  %v1130 = vadd.f32 %v970, %v1129
  %v1131 = vpop.f32.mrf.mxu0
  %1132 = vmatprep.mubr.bf16.mxu0 0
  %1133 = vmatmul.mubr.bf16.gmra.mxu0 %v943
  %v1134 = vpop.f32.mrf.mxu0
  %v1135 = vadd.f32 %v970, %v1134
  %v1136 = vpop.f32.mrf.mxu0
  %v1137 = vpop.f32.mrf.mxu0
  %v1138 = vadd.f32 %v970, %v1137
  %v1139 = vpop.f32.mrf.mxu0
  %1140 = vmatprep.mubr.bf16.mxu0 0
  %1141 = vmatmul.mubr.bf16.gmra.mxu0 %v944
  %v1142 = vpop.f32.mrf.mxu0
  %v1143 = vadd.f32 %v970, %v1142
  %v1144 = vpop.f32.mrf.mxu0
  %v1145 = vpop.f32.mrf.mxu0
  %v1146 = vadd.f32 %v970, %v1145
  %v1147 = vpop.f32.mrf.mxu0
  %1148 = vmatprep.mubr.bf16.mxu0 0
  %1149 = vmatmul.mubr.bf16.gmra.mxu0 %v945
  %v1150 = vpop.f32.mrf.mxu0
  %v1151 = vadd.f32 %v970, %v1150
  %v1152 = vpop.f32.mrf.mxu0
  %v1153 = vpop.f32.mrf.mxu0
  %v1154 = vadd.f32 %v970, %v1153
  %v1155 = vpop.f32.mrf.mxu0
  %1156 = vmatprep.mubr.bf16.mxu0 0
  %1157 = vmatmul.mubr.bf16.gmra.mxu0 %v946
  %v1158 = vpop.f32.mrf.mxu0
  %v1159 = vadd.f32 %v970, %v1158
  %v1160 = vpop.f32.mrf.mxu0
  %v1161 = vpop.f32.mrf.mxu0
  %v1162 = vadd.f32 %v970, %v1161
  %v1163 = vpop.f32.mrf.mxu0
  %1164 = vmatprep.mubr.bf16.mxu0 0
  %1165 = vmatmul.mubr.bf16.gmra.mxu0 %v947
  %v1166 = vpop.f32.mrf.mxu0
  %v1167 = vadd.f32 %v970, %v1166
  %v1168 = vpop.f32.mrf.mxu0
  %v1169 = vpop.f32.mrf.mxu0
  %v1170 = vadd.f32 %v970, %v1169
  %v1171 = vpop.f32.mrf.mxu0
  %1172 = vmatprep.mubr.bf16.mxu0 0
  %1173 = vmatmul.mubr.bf16.gmra.mxu0 %v948
  %v1174 = vpop.f32.mrf.mxu0
  %v1175 = vadd.f32 %v970, %v1174
  %v1176 = vpop.f32.mrf.mxu0
  %v1177 = vpop.f32.mrf.mxu0
  %v1178 = vadd.f32 %v970, %v1177
  %v1179 = vpop.f32.mrf.mxu0
  %1180 = vdwg.mxu0
  %v1181 = vmax.f32 %v1055, 0.0
  %v1182 = vmax.f32 %v1058, 0.0
  %v1183 = vmax.f32 %v1063, 0.0
  %v1184 = vmax.f32 %v1066, 0.0
  %v1185 = vmax.f32 %v1071, 0.0
  %v1186 = vmax.f32 %v1074, 0.0
  %v1187 = vmax.f32 %v1079, 0.0
  %v1188 = vmax.f32 %v1082, 0.0
  %v1189 = vmax.f32 %v1087, 0.0
  %v1190 = vmax.f32 %v1090, 0.0
  %v1191 = vmax.f32 %v1095, 0.0
  %v1192 = vmax.f32 %v1098, 0.0
  %v1193 = vmax.f32 %v1103, 0.0
  %v1194 = vmax.f32 %v1106, 0.0
  %v1195 = vmax.f32 %v1111, 0.0
  %v1196 = vmax.f32 %v1114, 0.0
  %v1197 = vmax.f32 %v1119, 0.0
  %v1198 = vmax.f32 %v1122, 0.0
  %v1199 = vmax.f32 %v1127, 0.0
  %v1200 = vmax.f32 %v1130, 0.0
  %v1201 = vmax.f32 %v1135, 0.0
  %v1202 = vmax.f32 %v1138, 0.0
  %v1203 = vmax.f32 %v1143, 0.0
  %v1204 = vmax.f32 %v1146, 0.0
  %v1205 = vmax.f32 %v1151, 0.0
  %v1206 = vmax.f32 %v1154, 0.0
  %v1207 = vmax.f32 %v1159, 0.0
  %v1208 = vmax.f32 %v1162, 0.0
  %v1209 = vmax.f32 %v1167, 0.0
  %v1210 = vmax.f32 %v1170, 0.0
  %v1211 = vmax.f32 %v1175, 0.0
  %v1212 = vmax.f32 %v1178, 0.0
  %v1213 = vpack.c.bf16 %v1182, %v1181
  %v1214 = vpack.c.bf16 %v1184, %v1183
  %v1215 = vpack.c.bf16 %v1186, %v1185
  %v1216 = vpack.c.bf16 %v1188, %v1187
  %v1217 = vpack.c.bf16 %v1190, %v1189
  %v1218 = vpack.c.bf16 %v1192, %v1191
  %v1219 = vpack.c.bf16 %v1194, %v1193
  %v1220 = vpack.c.bf16 %v1196, %v1195
  %v1221 = vpack.c.bf16 %v1198, %v1197
  %v1222 = vpack.c.bf16 %v1200, %v1199
  %v1223 = vpack.c.bf16 %v1202, %v1201
  %v1224 = vpack.c.bf16 %v1204, %v1203
  %v1225 = vpack.c.bf16 %v1206, %v1205
  %v1226 = vpack.c.bf16 %v1208, %v1207
  %v1227 = vpack.c.bf16 %v1210, %v1209
  %v1228 = vpack.c.bf16 %v1212, %v1211
  %v1229 = vld [vmem:[%s9] sm:$0xf]
  %v1230 = vld [vmem:[%s9 + $0x4] sm:$0xf]
  %v1231 = vld [vmem:[%s9 + $0x8] sm:$0xf]
  %v1232 = vld [vmem:[%s9 + $0xc] sm:$0xf]
  %v1233 = vld [vmem:[%s9 + $0x10] sm:$0xf]
  %v1234 = vld [vmem:[%s9 + $0x14] sm:$0xf]
  %v1235 = vld [vmem:[%s9 + $0x18] sm:$0xf]
  %v1236 = vld [vmem:[%s9 + $0x1c] sm:$0xf]
  %v1237 = vld [vmem:[%s9 + $0x20] sm:$0xf]
  %v1238 = vld [vmem:[%s9 + $0x24] sm:$0xf]
  %v1239 = vld [vmem:[%s9 + $0x28] sm:$0xf]
  %v1240 = vld [vmem:[%s9 + $0x2c] sm:$0xf]
  %v1241 = vld [vmem:[%s9 + $0x30] sm:$0xf]
  %v1242 = vld [vmem:[%s9 + $0x34] sm:$0xf]
  %v1243 = vld [vmem:[%s9 + $0x38] sm:$0xf]
  %v1244 = vld [vmem:[%s9 + $0x3c] sm:$0xf]
  %v1261 = vunpack.c.l.b16 %v1229
  %v1262 = vunpack.c.l.b16 %v1230
  %v1263 = vunpack.c.l.b16 %v1231
  %v1264 = vunpack.c.l.b16 %v1232
  %v1265 = vunpack.c.l.b16 %v1233
  %v1266 = vunpack.c.l.b16 %v1234
  %v1267 = vunpack.c.l.b16 %v1235
  %v1268 = vunpack.c.l.b16 %v1236
  %v1269 = vunpack.c.l.b16 %v1237
  %v1270 = vunpack.c.l.b16 %v1238
  %v1271 = vunpack.c.l.b16 %v1239
  %v1272 = vunpack.c.l.b16 %v1240
  %v1273 = vunpack.c.l.b16 %v1241
  %v1274 = vunpack.c.l.b16 %v1242
  %v1275 = vunpack.c.l.b16 %v1243
  %v1276 = vunpack.c.l.b16 %v1244
  %v1277 = vpack.c.b16 %v1262, %v1261
  %v1278 = vpack.c.b16 %v1264, %v1263
  %v1279 = vpack.c.b16 %v1266, %v1265
  %v1280 = vpack.c.b16 %v1268, %v1267
  %v1281 = vpack.c.b16 %v1270, %v1269
  %v1282 = vpack.c.b16 %v1272, %v1271
  %v1283 = vpack.c.b16 %v1274, %v1273
  %v1284 = vpack.c.b16 %v1276, %v1275
  %1293 = vmatprep.subr.bf16.mxu0 0
  %1294 = vmatpush1.bf16.msra.mxu0 %v1284
  %1295 = vmatprep.subr.bf16.mxu0 0
  %1296 = vmatpush1.bf16.msra.mxu0 %v1283
  %1297 = vmatprep.subr.bf16.mxu0 0
  %1298 = vmatpush1.bf16.msra.mxu0 %v1282
  %1299 = vmatprep.subr.bf16.mxu0 0
  %1300 = vmatpush1.bf16.msra.mxu0 %v1281
  %1301 = vmatprep.subr.bf16.mxu0 0
  %1302 = vmatpush1.bf16.msra.mxu0 %v1280
  %1303 = vmatprep.subr.bf16.mxu0 0
  %1304 = vmatpush1.bf16.msra.mxu0 %v1279
  %1305 = vmatprep.subr.bf16.mxu0 0
  %1306 = vmatpush1.bf16.msra.mxu0 %v1278
  %1307 = vmatprep.subr.bf16.mxu0 0
  %1308 = vmatpush1.bf16.msra.mxu0 %v1277
  %1309 = vmatprep.subr.bf16.mxu0 0
  %1310 = vmatpush2.bf16.msra.mxu0 0
  %1311 = vmatprep.subr.bf16.mxu0 0
  %1312 = vmatpush2.bf16.msra.mxu0 0
  %1313 = vmatprep.subr.bf16.mxu0 0
  %1314 = vmatpush2.bf16.msra.mxu0 0
  %1315 = vmatprep.subr.bf16.mxu0 0
  %1316 = vmatpush2.bf16.msra.mxu0 0
  %1317 = vmatprep.subr.bf16.mxu0 0
  %1318 = vmatpush2.bf16.msra.mxu0 0
  %1319 = vmatprep.subr.bf16.mxu0 0
  %1320 = vmatpush2.bf16.msra.mxu0 0
  %1321 = vmatprep.subr.bf16.mxu0 0
  %1322 = vmatpush2.bf16.msra.mxu0 0
  %1323 = vmatprep.subr.bf16.mxu0 0
  %1324 = vmatpush2.bf16.msra.mxu0 0
  %1325 = vmatprep.mubr.bf16.mxu0 0
  %1326 = vmatmul.mubr.bf16.gmra.mxu0 %v1213
  %v1327 = vpop.f32.mrf.mxu0
  %v1328 = vadd.f32 0.0, %v1327
  %v1329 = vpop.f32.mrf.mxu0
  %v1330 = vpop.f32.mrf.mxu0
  %v1331 = vadd.f32 0.0, %v1330
  %v1332 = vpop.f32.mrf.mxu0
  %1333 = vmatprep.mubr.bf16.mxu0 0
  %1334 = vmatmul.mubr.bf16.gmra.mxu0 %v1214
  %v1335 = vpop.f32.mrf.mxu0
  %v1336 = vadd.f32 0.0, %v1335
  %v1337 = vpop.f32.mrf.mxu0
  %v1338 = vpop.f32.mrf.mxu0
  %v1339 = vadd.f32 0.0, %v1338
  %v1340 = vpop.f32.mrf.mxu0
  %1341 = vmatprep.mubr.bf16.mxu0 0
  %1342 = vmatmul.mubr.bf16.gmra.mxu0 %v1215
  %v1343 = vpop.f32.mrf.mxu0
  %v1344 = vadd.f32 0.0, %v1343
  %v1345 = vpop.f32.mrf.mxu0
  %v1346 = vpop.f32.mrf.mxu0
  %v1347 = vadd.f32 0.0, %v1346
  %v1348 = vpop.f32.mrf.mxu0
  %1349 = vmatprep.mubr.bf16.mxu0 0
  %1350 = vmatmul.mubr.bf16.gmra.mxu0 %v1216
  %v1351 = vpop.f32.mrf.mxu0
  %v1352 = vadd.f32 0.0, %v1351
  %v1353 = vpop.f32.mrf.mxu0
  %v1354 = vpop.f32.mrf.mxu0
  %v1355 = vadd.f32 0.0, %v1354
  %v1356 = vpop.f32.mrf.mxu0
  %1357 = vmatprep.mubr.bf16.mxu0 0
  %1358 = vmatmul.mubr.bf16.gmra.mxu0 %v1217
  %v1359 = vpop.f32.mrf.mxu0
  %v1360 = vadd.f32 0.0, %v1359
  %v1361 = vpop.f32.mrf.mxu0
  %v1362 = vpop.f32.mrf.mxu0
  %v1363 = vadd.f32 0.0, %v1362
  %v1364 = vpop.f32.mrf.mxu0
  %1365 = vmatprep.mubr.bf16.mxu0 0
  %1366 = vmatmul.mubr.bf16.gmra.mxu0 %v1218
  %v1367 = vpop.f32.mrf.mxu0
  %v1368 = vadd.f32 0.0, %v1367
  %v1369 = vpop.f32.mrf.mxu0
  %v1370 = vpop.f32.mrf.mxu0
  %v1371 = vadd.f32 0.0, %v1370
  %v1372 = vpop.f32.mrf.mxu0
  %1373 = vmatprep.mubr.bf16.mxu0 0
  %1374 = vmatmul.mubr.bf16.gmra.mxu0 %v1219
  %v1375 = vpop.f32.mrf.mxu0
  %v1376 = vadd.f32 0.0, %v1375
  %v1377 = vpop.f32.mrf.mxu0
  %v1378 = vpop.f32.mrf.mxu0
  %v1379 = vadd.f32 0.0, %v1378
  %v1380 = vpop.f32.mrf.mxu0
  %1381 = vmatprep.mubr.bf16.mxu0 0
  %1382 = vmatmul.mubr.bf16.gmra.mxu0 %v1220
  %v1383 = vpop.f32.mrf.mxu0
  %v1384 = vadd.f32 0.0, %v1383
  %v1385 = vpop.f32.mrf.mxu0
  %v1386 = vpop.f32.mrf.mxu0
  %v1387 = vadd.f32 0.0, %v1386
  %v1388 = vpop.f32.mrf.mxu0
  %1389 = vmatprep.mubr.bf16.mxu0 0
  %1390 = vmatmul.mubr.bf16.gmra.mxu0 %v1221
  %v1391 = vpop.f32.mrf.mxu0
  %v1392 = vadd.f32 0.0, %v1391
  %v1393 = vpop.f32.mrf.mxu0
  %v1394 = vpop.f32.mrf.mxu0
  %v1395 = vadd.f32 0.0, %v1394
  %v1396 = vpop.f32.mrf.mxu0
  %1397 = vmatprep.mubr.bf16.mxu0 0
  %1398 = vmatmul.mubr.bf16.gmra.mxu0 %v1222
  %v1399 = vpop.f32.mrf.mxu0
  %v1400 = vadd.f32 0.0, %v1399
  %v1401 = vpop.f32.mrf.mxu0
  %v1402 = vpop.f32.mrf.mxu0
  %v1403 = vadd.f32 0.0, %v1402
  %v1404 = vpop.f32.mrf.mxu0
  %1405 = vmatprep.mubr.bf16.mxu0 0
  %1406 = vmatmul.mubr.bf16.gmra.mxu0 %v1223
  %v1407 = vpop.f32.mrf.mxu0
  %v1408 = vadd.f32 0.0, %v1407
  %v1409 = vpop.f32.mrf.mxu0
  %v1410 = vpop.f32.mrf.mxu0
  %v1411 = vadd.f32 0.0, %v1410
  %v1412 = vpop.f32.mrf.mxu0
  %1413 = vmatprep.mubr.bf16.mxu0 0
  %1414 = vmatmul.mubr.bf16.gmra.mxu0 %v1224
  %v1415 = vpop.f32.mrf.mxu0
  %v1416 = vadd.f32 0.0, %v1415
  %v1417 = vpop.f32.mrf.mxu0
  %v1418 = vpop.f32.mrf.mxu0
  %v1419 = vadd.f32 0.0, %v1418
  %v1420 = vpop.f32.mrf.mxu0
  %1421 = vmatprep.mubr.bf16.mxu0 0
  %1422 = vmatmul.mubr.bf16.gmra.mxu0 %v1225
  %v1423 = vpop.f32.mrf.mxu0
  %v1424 = vadd.f32 0.0, %v1423
  %v1425 = vpop.f32.mrf.mxu0
  %v1426 = vpop.f32.mrf.mxu0
  %v1427 = vadd.f32 0.0, %v1426
  %v1428 = vpop.f32.mrf.mxu0
  %1429 = vmatprep.mubr.bf16.mxu0 0
  %1430 = vmatmul.mubr.bf16.gmra.mxu0 %v1226
  %v1431 = vpop.f32.mrf.mxu0
  %v1432 = vadd.f32 0.0, %v1431
  %v1433 = vpop.f32.mrf.mxu0
  %v1434 = vpop.f32.mrf.mxu0
  %v1435 = vadd.f32 0.0, %v1434
  %v1436 = vpop.f32.mrf.mxu0
  %1437 = vmatprep.mubr.bf16.mxu0 0
  %1438 = vmatmul.mubr.bf16.gmra.mxu0 %v1227
  %v1439 = vpop.f32.mrf.mxu0
  %v1440 = vadd.f32 0.0, %v1439
  %v1441 = vpop.f32.mrf.mxu0
  %v1442 = vpop.f32.mrf.mxu0
  %v1443 = vadd.f32 0.0, %v1442
  %v1444 = vpop.f32.mrf.mxu0
  %1445 = vmatprep.mubr.bf16.mxu0 0
  %1446 = vmatmul.mubr.bf16.gmra.mxu0 %v1228
  %v1447 = vpop.f32.mrf.mxu0
  %v1448 = vadd.f32 0.0, %v1447
  %v1449 = vpop.f32.mrf.mxu0
  %v1450 = vpop.f32.mrf.mxu0
  %v1451 = vadd.f32 0.0, %v1450
  %v1452 = vpop.f32.mrf.mxu0
  %1453 = vdwg.mxu0
  %v1454 = vadd.f32 %v901, %v1328
  %v1455 = vadd.f32 %v902, %v1331
  %v1456 = vadd.f32 %v903, %v1336
  %v1457 = vadd.f32 %v904, %v1339
  %v1458 = vadd.f32 %v905, %v1344
  %v1459 = vadd.f32 %v906, %v1347
  %v1460 = vadd.f32 %v907, %v1352
  %v1461 = vadd.f32 %v908, %v1355
  %v1462 = vadd.f32 %v909, %v1360
  %v1463 = vadd.f32 %v910, %v1363
  %v1464 = vadd.f32 %v911, %v1368
  %v1465 = vadd.f32 %v912, %v1371
  %v1466 = vadd.f32 %v913, %v1376
  %v1467 = vadd.f32 %v914, %v1379
  %v1468 = vadd.f32 %v915, %v1384
  %v1469 = vadd.f32 %v916, %v1387
  %v1470 = vadd.f32 %v917, %v1392
  %v1471 = vadd.f32 %v918, %v1395
  %v1472 = vadd.f32 %v919, %v1400
  %v1473 = vadd.f32 %v920, %v1403
  %v1474 = vadd.f32 %v921, %v1408
  %v1475 = vadd.f32 %v922, %v1411
  %v1476 = vadd.f32 %v923, %v1416
  %v1477 = vadd.f32 %v924, %v1419
  %v1478 = vadd.f32 %v925, %v1424
  %v1479 = vadd.f32 %v926, %v1427
  %v1480 = vadd.f32 %v927, %v1432
  %v1481 = vadd.f32 %v928, %v1435
  %v1482 = vadd.f32 %v929, %v1440
  %v1483 = vadd.f32 %v930, %v1443
  %v1484 = vadd.f32 %v931, %v1448
  %v1485 = vadd.f32 %v932, %v1451
  %v1486 = vld [vmem:[%s10] sm:$0x1]
  %v1488 = vlaneseq
  %v1489 = vshrl.u32 %v1488, 7
  %v1490 = vsub.s32 0, %v1489
  %v1491 = vrot.slane %v1486, %v1490
  %v1493 = vadd.f32 %v1454, %v1491
  %v1494 = vadd.f32 %v1455, %v1491
  %v1495 = vadd.f32 %v1456, %v1491
  %v1496 = vadd.f32 %v1457, %v1491
  %v1497 = vadd.f32 %v1458, %v1491
  %v1498 = vadd.f32 %v1459, %v1491
  %v1499 = vadd.f32 %v1460, %v1491
  %v1500 = vadd.f32 %v1461, %v1491
  %v1501 = vadd.f32 %v1462, %v1491
  %v1502 = vadd.f32 %v1463, %v1491
  %v1503 = vadd.f32 %v1464, %v1491
  %v1504 = vadd.f32 %v1465, %v1491
  %v1505 = vadd.f32 %v1466, %v1491
  %v1506 = vadd.f32 %v1467, %v1491
  %v1507 = vadd.f32 %v1468, %v1491
  %v1508 = vadd.f32 %v1469, %v1491
  %v1509 = vadd.f32 %v1470, %v1491
  %v1510 = vadd.f32 %v1471, %v1491
  %v1511 = vadd.f32 %v1472, %v1491
  %v1512 = vadd.f32 %v1473, %v1491
  %v1513 = vadd.f32 %v1474, %v1491
  %v1514 = vadd.f32 %v1475, %v1491
  %v1515 = vadd.f32 %v1476, %v1491
  %v1516 = vadd.f32 %v1477, %v1491
  %v1517 = vadd.f32 %v1478, %v1491
  %v1518 = vadd.f32 %v1479, %v1491
  %v1519 = vadd.f32 %v1480, %v1491
  %v1520 = vadd.f32 %v1481, %v1491
  %v1521 = vadd.f32 %v1482, %v1491
  %v1522 = vadd.f32 %v1483, %v1491
  %v1523 = vadd.f32 %v1484, %v1491
  %v1524 = vadd.f32 %v1485, %v1491
  %v1525 = vpack.c.bf16 %v1494, %v1493
  %v1526 = vpack.c.bf16 %v1496, %v1495
  %v1527 = vpack.c.bf16 %v1498, %v1497
  %v1528 = vpack.c.bf16 %v1500, %v1499
  %v1529 = vpack.c.bf16 %v1502, %v1501
  %v1530 = vpack.c.bf16 %v1504, %v1503
  %v1531 = vpack.c.bf16 %v1506, %v1505
  %v1532 = vpack.c.bf16 %v1508, %v1507
  %v1533 = vpack.c.bf16 %v1510, %v1509
  %v1534 = vpack.c.bf16 %v1512, %v1511
  %v1535 = vpack.c.bf16 %v1514, %v1513
  %v1536 = vpack.c.bf16 %v1516, %v1515
  %v1537 = vpack.c.bf16 %v1518, %v1517
  %v1538 = vpack.c.bf16 %v1520, %v1519
  %v1539 = vpack.c.bf16 %v1522, %v1521
  %v1540 = vpack.c.bf16 %v1524, %v1523
  %v1541 = vld [vmem:[%s11] sm:$0xf]
  %v1542 = vld [vmem:[%s11 + $0x4] sm:$0xf]
  %v1543 = vld [vmem:[%s11 + $0x8] sm:$0xf]
  %v1544 = vld [vmem:[%s11 + $0xc] sm:$0xf]
  %v1545 = vld [vmem:[%s11 + $0x10] sm:$0xf]
  %v1546 = vld [vmem:[%s11 + $0x14] sm:$0xf]
  %v1547 = vld [vmem:[%s11 + $0x18] sm:$0xf]
  %v1548 = vld [vmem:[%s11 + $0x1c] sm:$0xf]
  %v1549 = vld [vmem:[%s11 + $0x20] sm:$0xf]
  %v1550 = vld [vmem:[%s11 + $0x24] sm:$0xf]
  %v1551 = vld [vmem:[%s11 + $0x28] sm:$0xf]
  %v1552 = vld [vmem:[%s11 + $0x2c] sm:$0xf]
  %v1553 = vld [vmem:[%s11 + $0x30] sm:$0xf]
  %v1554 = vld [vmem:[%s11 + $0x34] sm:$0xf]
  %v1555 = vld [vmem:[%s11 + $0x38] sm:$0xf]
  %v1556 = vld [vmem:[%s11 + $0x3c] sm:$0xf]
  %v1557 = vld [vmem:[%s12] sm:$0x1]
  %v1559 = vlaneseq
  %v1560 = vshrl.u32 %v1559, 7
  %v1561 = vsub.s32 0, %v1560
  %v1562 = vrot.slane %v1557, %v1561
  %v1580 = vunpack.c.l.b16 %v1541
  %v1581 = vunpack.c.l.b16 %v1542
  %v1582 = vunpack.c.l.b16 %v1543
  %v1583 = vunpack.c.l.b16 %v1544
  %v1584 = vunpack.c.l.b16 %v1545
  %v1585 = vunpack.c.l.b16 %v1546
  %v1586 = vunpack.c.l.b16 %v1547
  %v1587 = vunpack.c.l.b16 %v1548
  %v1588 = vunpack.c.l.b16 %v1549
  %v1589 = vunpack.c.l.b16 %v1550
  %v1590 = vunpack.c.l.b16 %v1551
  %v1591 = vunpack.c.l.b16 %v1552
  %v1592 = vunpack.c.l.b16 %v1553
  %v1593 = vunpack.c.l.b16 %v1554
  %v1594 = vunpack.c.l.b16 %v1555
  %v1595 = vunpack.c.l.b16 %v1556
  %v1596 = vpack.c.b16 %v1581, %v1580
  %v1597 = vpack.c.b16 %v1583, %v1582
  %v1598 = vpack.c.b16 %v1585, %v1584
  %v1599 = vpack.c.b16 %v1587, %v1586
  %v1600 = vpack.c.b16 %v1589, %v1588
  %v1601 = vpack.c.b16 %v1591, %v1590
  %v1602 = vpack.c.b16 %v1593, %v1592
  %v1603 = vpack.c.b16 %v1595, %v1594
  %1612 = vmatprep.subr.bf16.mxu0 0
  %1613 = vmatpush1.bf16.msra.mxu0 %v1603
  %1614 = vmatprep.subr.bf16.mxu0 0
  %1615 = vmatpush1.bf16.msra.mxu0 %v1602
  %1616 = vmatprep.subr.bf16.mxu0 0
  %1617 = vmatpush1.bf16.msra.mxu0 %v1601
  %1618 = vmatprep.subr.bf16.mxu0 0
  %1619 = vmatpush1.bf16.msra.mxu0 %v1600
  %1620 = vmatprep.subr.bf16.mxu0 0
  %1621 = vmatpush1.bf16.msra.mxu0 %v1599
  %1622 = vmatprep.subr.bf16.mxu0 0
  %1623 = vmatpush1.bf16.msra.mxu0 %v1598
  %1624 = vmatprep.subr.bf16.mxu0 0
  %1625 = vmatpush1.bf16.msra.mxu0 %v1597
  %1626 = vmatprep.subr.bf16.mxu0 0
  %1627 = vmatpush1.bf16.msra.mxu0 %v1596
  %1628 = vmatprep.subr.bf16.mxu0 0
  %1629 = vmatpush2.bf16.msra.mxu0 0
  %1630 = vmatprep.subr.bf16.mxu0 0
  %1631 = vmatpush2.bf16.msra.mxu0 0
  %1632 = vmatprep.subr.bf16.mxu0 0
  %1633 = vmatpush2.bf16.msra.mxu0 0
  %1634 = vmatprep.subr.bf16.mxu0 0
  %1635 = vmatpush2.bf16.msra.mxu0 0
  %1636 = vmatprep.subr.bf16.mxu0 0
  %1637 = vmatpush2.bf16.msra.mxu0 0
  %1638 = vmatprep.subr.bf16.mxu0 0
  %1639 = vmatpush2.bf16.msra.mxu0 0
  %1640 = vmatprep.subr.bf16.mxu0 0
  %1641 = vmatpush2.bf16.msra.mxu0 0
  %1642 = vmatprep.subr.bf16.mxu0 0
  %1643 = vmatpush2.bf16.msra.mxu0 0
  %1644 = vmatprep.mubr.bf16.mxu0 0
  %1645 = vmatmul.mubr.bf16.gmra.mxu0 %v1525
  %v1646 = vpop.f32.mrf.mxu0
  %v1647 = vadd.f32 %v1562, %v1646
  %v1648 = vpop.f32.mrf.mxu0
  %v1649 = vpop.f32.mrf.mxu0
  %v1650 = vadd.f32 %v1562, %v1649
  %v1651 = vpop.f32.mrf.mxu0
  %1652 = vmatprep.mubr.bf16.mxu0 0
  %1653 = vmatmul.mubr.bf16.gmra.mxu0 %v1526
  %v1654 = vpop.f32.mrf.mxu0
  %v1655 = vadd.f32 %v1562, %v1654
  %v1656 = vpop.f32.mrf.mxu0
  %v1657 = vpop.f32.mrf.mxu0
  %v1658 = vadd.f32 %v1562, %v1657
  %v1659 = vpop.f32.mrf.mxu0
  %1660 = vmatprep.mubr.bf16.mxu0 0
  %1661 = vmatmul.mubr.bf16.gmra.mxu0 %v1527
  %v1662 = vpop.f32.mrf.mxu0
  %v1663 = vadd.f32 %v1562, %v1662
  %v1664 = vpop.f32.mrf.mxu0
  %v1665 = vpop.f32.mrf.mxu0
  %v1666 = vadd.f32 %v1562, %v1665
  %v1667 = vpop.f32.mrf.mxu0
  %1668 = vmatprep.mubr.bf16.mxu0 0
  %1669 = vmatmul.mubr.bf16.gmra.mxu0 %v1528
  %v1670 = vpop.f32.mrf.mxu0
  %v1671 = vadd.f32 %v1562, %v1670
  %v1672 = vpop.f32.mrf.mxu0
  %v1673 = vpop.f32.mrf.mxu0
  %v1674 = vadd.f32 %v1562, %v1673
  %v1675 = vpop.f32.mrf.mxu0
  %1676 = vmatprep.mubr.bf16.mxu0 0
  %1677 = vmatmul.mubr.bf16.gmra.mxu0 %v1529
  %v1678 = vpop.f32.mrf.mxu0
  %v1679 = vadd.f32 %v1562, %v1678
  %v1680 = vpop.f32.mrf.mxu0
  %v1681 = vpop.f32.mrf.mxu0
  %v1682 = vadd.f32 %v1562, %v1681
  %v1683 = vpop.f32.mrf.mxu0
  %1684 = vmatprep.mubr.bf16.mxu0 0
  %1685 = vmatmul.mubr.bf16.gmra.mxu0 %v1530
  %v1686 = vpop.f32.mrf.mxu0
  %v1687 = vadd.f32 %v1562, %v1686
  %v1688 = vpop.f32.mrf.mxu0
  %v1689 = vpop.f32.mrf.mxu0
  %v1690 = vadd.f32 %v1562, %v1689
  %v1691 = vpop.f32.mrf.mxu0
  %1692 = vmatprep.mubr.bf16.mxu0 0
  %1693 = vmatmul.mubr.bf16.gmra.mxu0 %v1531
  %v1694 = vpop.f32.mrf.mxu0
  %v1695 = vadd.f32 %v1562, %v1694
  %v1696 = vpop.f32.mrf.mxu0
  %v1697 = vpop.f32.mrf.mxu0
  %v1698 = vadd.f32 %v1562, %v1697
  %v1699 = vpop.f32.mrf.mxu0
  %1700 = vmatprep.mubr.bf16.mxu0 0
  %1701 = vmatmul.mubr.bf16.gmra.mxu0 %v1532
  %v1702 = vpop.f32.mrf.mxu0
  %v1703 = vadd.f32 %v1562, %v1702
  %v1704 = vpop.f32.mrf.mxu0
  %v1705 = vpop.f32.mrf.mxu0
  %v1706 = vadd.f32 %v1562, %v1705
  %v1707 = vpop.f32.mrf.mxu0
  %1708 = vmatprep.mubr.bf16.mxu0 0
  %1709 = vmatmul.mubr.bf16.gmra.mxu0 %v1533
  %v1710 = vpop.f32.mrf.mxu0
  %v1711 = vadd.f32 %v1562, %v1710
  %v1712 = vpop.f32.mrf.mxu0
  %v1713 = vpop.f32.mrf.mxu0
  %v1714 = vadd.f32 %v1562, %v1713
  %v1715 = vpop.f32.mrf.mxu0
  %1716 = vmatprep.mubr.bf16.mxu0 0
  %1717 = vmatmul.mubr.bf16.gmra.mxu0 %v1534
  %v1718 = vpop.f32.mrf.mxu0
  %v1719 = vadd.f32 %v1562, %v1718
  %v1720 = vpop.f32.mrf.mxu0
  %v1721 = vpop.f32.mrf.mxu0
  %v1722 = vadd.f32 %v1562, %v1721
  %v1723 = vpop.f32.mrf.mxu0
  %1724 = vmatprep.mubr.bf16.mxu0 0
  %1725 = vmatmul.mubr.bf16.gmra.mxu0 %v1535
  %v1726 = vpop.f32.mrf.mxu0
  %v1727 = vadd.f32 %v1562, %v1726
  %v1728 = vpop.f32.mrf.mxu0
  %v1729 = vpop.f32.mrf.mxu0
  %v1730 = vadd.f32 %v1562, %v1729
  %v1731 = vpop.f32.mrf.mxu0
  %1732 = vmatprep.mubr.bf16.mxu0 0
  %1733 = vmatmul.mubr.bf16.gmra.mxu0 %v1536
  %v1734 = vpop.f32.mrf.mxu0
  %v1735 = vadd.f32 %v1562, %v1734
  %v1736 = vpop.f32.mrf.mxu0
  %v1737 = vpop.f32.mrf.mxu0
  %v1738 = vadd.f32 %v1562, %v1737
  %v1739 = vpop.f32.mrf.mxu0
  %1740 = vmatprep.mubr.bf16.mxu0 0
  %1741 = vmatmul.mubr.bf16.gmra.mxu0 %v1537
  %v1742 = vpop.f32.mrf.mxu0
  %v1743 = vadd.f32 %v1562, %v1742
  %v1744 = vpop.f32.mrf.mxu0
  %v1745 = vpop.f32.mrf.mxu0
  %v1746 = vadd.f32 %v1562, %v1745
  %v1747 = vpop.f32.mrf.mxu0
  %1748 = vmatprep.mubr.bf16.mxu0 0
  %1749 = vmatmul.mubr.bf16.gmra.mxu0 %v1538
  %v1750 = vpop.f32.mrf.mxu0
  %v1751 = vadd.f32 %v1562, %v1750
  %v1752 = vpop.f32.mrf.mxu0
  %v1753 = vpop.f32.mrf.mxu0
  %v1754 = vadd.f32 %v1562, %v1753
  %v1755 = vpop.f32.mrf.mxu0
  %1756 = vmatprep.mubr.bf16.mxu0 0
  %1757 = vmatmul.mubr.bf16.gmra.mxu0 %v1539
  %v1758 = vpop.f32.mrf.mxu0
  %v1759 = vadd.f32 %v1562, %v1758
  %v1760 = vpop.f32.mrf.mxu0
  %v1761 = vpop.f32.mrf.mxu0
  %v1762 = vadd.f32 %v1562, %v1761
  %v1763 = vpop.f32.mrf.mxu0
  %1764 = vmatprep.mubr.bf16.mxu0 0
  %1765 = vmatmul.mubr.bf16.gmra.mxu0 %v1540
  %v1766 = vpop.f32.mrf.mxu0
  %v1767 = vadd.f32 %v1562, %v1766
  %v1768 = vpop.f32.mrf.mxu0
  %v1769 = vpop.f32.mrf.mxu0
  %v1770 = vadd.f32 %v1562, %v1769
  %v1771 = vpop.f32.mrf.mxu0
  %1772 = vdwg.mxu0
  %1773 = vst [vmem:[%s13] sm:$0xff] %v1647
  %1774 = vst [vmem:[%s13 + $0x8] sm:$0xff] %v1650
  %1775 = vst [vmem:[%s13 + $0x10] sm:$0xff] %v1655
  %1776 = vst [vmem:[%s13 + $0x18] sm:$0xff] %v1658
  %1777 = vst [vmem:[%s13 + $0x20] sm:$0xff] %v1663
  %1778 = vst [vmem:[%s13 + $0x28] sm:$0xff] %v1666
  %1779 = vst [vmem:[%s13 + $0x30] sm:$0xff] %v1671
  %1780 = vst [vmem:[%s13 + $0x38] sm:$0xff] %v1674
  %1781 = vst [vmem:[%s13 + $0x40] sm:$0xff] %v1679
  %1782 = vst [vmem:[%s13 + $0x48] sm:$0xff] %v1682
  %1783 = vst [vmem:[%s13 + $0x50] sm:$0xff] %v1687
  %1784 = vst [vmem:[%s13 + $0x58] sm:$0xff] %v1690
  %1785 = vst [vmem:[%s13 + $0x60] sm:$0xff] %v1695
  %1786 = vst [vmem:[%s13 + $0x68] sm:$0xff] %v1698
  %1787 = vst [vmem:[%s13 + $0x70] sm:$0xff] %v1703
  %1788 = vst [vmem:[%s13 + $0x78] sm:$0xff] %v1706
  %1789 = vst [vmem:[%s13 + $0x80] sm:$0xff] %v1711
  %1790 = vst [vmem:[%s13 + $0x88] sm:$0xff] %v1714
  %1791 = vst [vmem:[%s13 + $0x90] sm:$0xff] %v1719
  %1792 = vst [vmem:[%s13 + $0x98] sm:$0xff] %v1722
  %1793 = vst [vmem:[%s13 + $0xa0] sm:$0xff] %v1727
  %1794 = vst [vmem:[%s13 + $0xa8] sm:$0xff] %v1730
  %1795 = vst [vmem:[%s13 + $0xb0] sm:$0xff] %v1735
  %1796 = vst [vmem:[%s13 + $0xb8] sm:$0xff] %v1738
  %1797 = vst [vmem:[%s13 + $0xc0] sm:$0xff] %v1743
  %1798 = vst [vmem:[%s13 + $0xc8] sm:$0xff] %v1746
  %1799 = vst [vmem:[%s13 + $0xd0] sm:$0xff] %v1751
  %1800 = vst [vmem:[%s13 + $0xd8] sm:$0xff] %v1754
  %1801 = vst [vmem:[%s13 + $0xe0] sm:$0xff] %v1759
  %1802 = vst [vmem:[%s13 + $0xe8] sm:$0xff] %v1762
  %1803 = vst [vmem:[%s13 + $0xf0] sm:$0xff] %v1767
  %1804 = vst [vmem:[%s13 + $0xf8] sm:$0xff] %v1770
  // Predicated region
  $region54: #{bps_diffusion_forward.1} parent=0 // pred_check
    _
  $region55: #{bps_diffusion_forward.1} parent=0 // pred_check_branch
    %1806 = sbr.rel (0) target = $region57
  $region56: #{bps_diffusion_forward.1} parent=0 // pred_region
    _
  $region57: #{bps_diffusion_forward.1} parent=0 // pred_fallthru
    _
  // Predicated region
  $region58: #{bps_diffusion_forward.1} parent=0 // pred_check
    _
  $region59: #{bps_diffusion_forward.1} parent=0 // pred_check_branch
    %1808 = sbr.rel (0) target = $region61
  $region60: #{bps_diffusion_forward.1} parent=0 // pred_region
    _
  $region61: #{bps_diffusion_forward.1} parent=0 // pred_fallthru
    _

</llo_original>
